<compile_context>
chip_gen: v5e
topology: v5e:2x2
jax: 0.10.0
libtpu: 0.0.40
codegen_flags: <defaults>
</compile_context>

<pallas_src>
import numpy as np
import jax
import jax.numpy as jnp
from jax.experimental import pallas as pl
from jax.experimental.pallas import tpu as pltpu

EPS = 1e-5


# --------------------------- shared per-tile compute ---------------------------
def _gated_tile(feat_ref, atom_ref, wnb_ref, ws_ref, b_ref):
    """Gated features for one atom tile (recomputed in both kernels).

    feat_ref : (tna*M, A+Bf) bf16  [atom_nbr | bond] features, one row per (atom, nbr)
    atom_ref : (tna, A)      f32   self features (cast to bf16 for the MXU)
    wnb_ref  : (A+Bf, 2A)    bf16  fc_full weight block for [nbr | bond]
    ws_ref   : (A, 2A)       bf16  fc_full weight block for the self features
    b_ref    : (1, 2A)       f32   fc_full bias
    returns  : (tna, M, 2A)  f32
    """
    tna = atom_ref.shape[0]
    Dout = wnb_ref.shape[-1]
    M = feat_ref.shape[0] // tna
    y = jnp.dot(feat_ref[...], wnb_ref[...], preferred_element_type=jnp.float32)
    st = jnp.dot(atom_ref[...].astype(jnp.bfloat16), ws_ref[...],
                 preferred_element_type=jnp.float32) + b_ref[...]
    return y.reshape(tna, M, Dout) + st[:, None, :]


# ----------- Kernel 1: merged bf16 matmul + masked bn1 partial statistics -----------
def _fc_stats_kernel(feat_ref, atom_ref, mask_ref, wnb_ref, ws_ref, b_ref, stats_ref):
    tna = atom_ref.shape[0]
    Dout = wnb_ref.shape[-1]
    M = feat_ref.shape[0] // tna
    y3 = _gated_tile(feat_ref, atom_ref, wnb_ref, ws_ref, b_ref)
    y2 = y3.reshape(tna * M, Dout)
    ym = (y3 * mask_ref[...]).reshape(tna * M, Dout)      # masked rows only
    s = jnp.sum(ym, axis=0, keepdims=True)                # (1, Dout)  sum(x)
    ss = jnp.sum(ym * y2, axis=0, keepdims=True)          # (1, Dout)  sum(x^2)  (mask^2 == mask)
    # Pack [sum; sum_sq; zeros] into a single (8, Dout) lane-dense block.
    row = jax.lax.broadcasted_iota(jnp.int32, (8, Dout), 0)
    stats = jnp.where(row == 0, jnp.broadcast_to(s, (8, Dout)),
                      jnp.where(row == 1, jnp.broadcast_to(ss, (8, Dout)), 0.0))
    stats_ref[...] = stats[None]


# --- Kernel 2: recompute gated + folded bn1 + gating + masked neighbor reduction ---
def _gate_reduce_kernel(feat_ref, atom_ref, mask_ref, wnb_ref, ws_ref, b_ref,
                        sc_ref, sh_ref, out_ref):
    tna = atom_ref.shape[0]
    Dout = wnb_ref.shape[-1]
    M = feat_ref.shape[0] // tna
    A = Dout // 2
    y3 = _gated_tile(feat_ref, atom_ref, wnb_ref, ws_ref, b_ref)
    gn = y3.reshape(tna * M, Dout) * sc_ref[...] + sh_ref[...]   # folded bn1 affine (FMA)
    # Numerically stable sigmoid/softplus sharing ONE exp pass on the EUP:
    #   e = exp(-|x|); sigmoid(x) = where(x>=0, 1, e) / (1+e)
    #   softplus(x)   = max(x, 0) + log1p(e)
    e = jnp.exp(-jnp.abs(gn))
    r = pl.reciprocal(1.0 + e, approx=True)
    sig = jnp.where(gn >= 0, 1.0, e) * r
    sp = jnp.maximum(gn, 0.0) + jnp.log1p(e)
    # Roll the core half's softplus into lanes [0:A): lanes [0:A) of prod are
    # sigmoid(filter) * softplus(core); lanes [A:2A) are finite garbage that is
    # sliced off in JAX.  (Never reduce `sumed` over the full lane width.)
    prod = sig * pltpu.roll(sp, A, 1)
    prod3 = prod.reshape(tna, M, Dout) * mask_ref[...]           # pad mask (required)
    out_ref[...] = jnp.sum(prod3, axis=1)                        # (tna, Dout) lane-dense


def prepare_params(W, b, g1, be1, g2, be2, atom_fea_len):
    """Split / transpose / cast fc_full weights ONCE (outside the per-call path)."""
    A = atom_fea_len
    W = jnp.asarray(W, jnp.float32)
    return dict(
        Ws_T=jnp.asarray(W[:, :A].T, jnp.bfloat16),    # (A,     2A)  self block
        Wnb_T=jnp.asarray(W[:, A:].T, jnp.bfloat16),   # (A+Bf,  2A)  [nbr | bond] block
        b=jnp.asarray(b, jnp.float32).reshape(1, -1),
        g1=jnp.asarray(g1, jnp.float32), be1=jnp.asarray(be1, jnp.float32),
        g2=jnp.asarray(g2, jnp.float32), be2=jnp.asarray(be2, jnp.float32))


def _pick_tile(N, M, tna_req):
    """Largest usable atom tile: multiple of 8, keeps grid1 >= 2 when N allows it
    (v7x 2-TC sharding), and keeps the bf16 feature tile sublanes a multiple of 16."""
    tna = max(8, (int(tna_req) // 8) * 8)
    if N > 8:
        half = -(-N // 2)
        tna = min(tna, ((half + 7) // 8) * 8)
    else:
        tna = 8
    while (tna * M) % 16:
        tna += 8
    return tna


def conv_layer_forward(atom_in, nbr_fea, nbr_idx, pad, params, *, tna=256):
    N, A = atom_in.shape
    M = nbr_idx.shape[1]
    Bf = nbr_fea.shape[-1]
    Dout = 2 * A
    Kf = A + Bf

    tna = _pick_tile(N, M, tna)
    grid1 = pl.cdiv(N, tna)
    Np = grid1 * tna               # atom axis padded so grids are exact
    tm = tna * M                   # (atom, nbr) rows per tile

    # --- JAX glue ---
    # TODO(synk): the data-dependent row gather atom_in[nbr_fea_idx] stays in XLA;
    # an in-kernel gather (VMEM-resident atom_in + SMEM-prefetched nbr_idx) would
    # remove this HBM stream, but jnp.take-on-a-VMEM-ref lowering is not robust
    # across jax versions, so XLA gathers (in bf16, halving the materialized stream).
    atom_nbr = jnp.take(atom_in.astype(jnp.bfloat16), nbr_idx.reshape(-1), axis=0)
    feat = jnp.concatenate(
        [atom_nbr, nbr_fea.astype(jnp.bfloat16).reshape(N * M, Bf)], axis=1)  # (N*M, A+Bf) bf16
    mask = pad.astype(jnp.float32).reshape(N, M, 1)
    atom_f32 = atom_in.astype(jnp.float32)

    padN = Np - N
    if padN:
        feat = jnp.pad(feat, ((0, padN * M), (0, 0)))
        atom_f32 = jnp.pad(atom_f32, ((0, padN), (0, 0)))
        mask = jnp.pad(mask, ((0, padN), (0, 0), (0, 0)))

    # VMEM budget: double-buffered IO + f32 elementwise temporaries (with margin).
    est = (2 * (tm * Kf * 2 + tna * A * 4 + tna * Dout * 4 + tna * M * 4)
           + 8 * tm * Dout * 4)
    vmem_limit = int(min(64 * 1024 * 1024, max(32 * 1024 * 1024, 2 * est)))
    cparams = pltpu.CompilerParams(dimension_semantics=("parallel",),
                                   vmem_limit_bytes=vmem_limit)

    feat_spec = pl.BlockSpec((tm, Kf), lambda i: (i, 0))
    atom_spec = pl.BlockSpec((tna, A), lambda i: (i, 0))
    mask_spec = pl.BlockSpec((tna, M, 1), lambda i: (i, 0, 0))
    wnb_spec = pl.BlockSpec((Kf, Dout), lambda i: (0, 0))
    ws_spec = pl.BlockSpec((A, Dout), lambda i: (0, 0))
    vec_spec = pl.BlockSpec((1, Dout), lambda i: (0, 0))

    # --- K1: merged bf16 matmul + masked bn1 partial stats (packed per-tile block) ---
    stats = pl.pallas_call(
        _fc_stats_kernel,
        out_shape=jax.ShapeDtypeStruct((grid1, 8, Dout), jnp.float32),
        grid=(grid1,),
        in_specs=[feat_spec, atom_spec, mask_spec, wnb_spec, ws_spec, vec_spec],
        out_specs=pl.BlockSpec((1, 8, Dout), lambda i: (i, 0, 0)),
        compiler_params=cparams,
    )(feat, atom_f32, mask, params["Wnb_T"], params["Ws_T"], params["b"])

    # --- bn1 finalization + affine fold (tiny, JAX) ---
    cnt = jnp.sum(pad.astype(jnp.float32))
    s1 = jnp.sum(stats[:, 0, :], axis=0)
    ss1 = jnp.sum(stats[:, 1, :], axis=0)
    mu1 = s1 / cnt
    var1 = jnp.maximum(ss1 / cnt - mu1 * mu1, 0.0)   # biased var (training BN), one-pass
    inv1 = jax.lax.rsqrt(var1 + EPS)
    scale1 = (params["g1"] * inv1).reshape(1, Dout)
    shift1 = (params["be1"] - mu1 * params["g1"] * inv1).reshape(1, Dout)

    # --- K2: recompute gated (no HBM roundtrip) + bn1 apply + gating + reduction ---
    sumed = pl.pallas_call(
        _gate_reduce_kernel,
        out_shape=jax.ShapeDtypeStruct((Np, Dout), jnp.float32),
        grid=(grid1,),
        in_specs=[feat_spec, atom_spec, mask_spec, wnb_spec, ws_spec, vec_spec,
                  vec_spec, vec_spec],
        out_specs=pl.BlockSpec((tna, Dout), lambda i: (i, 0)),
        compiler_params=cparams,
    )(feat, atom_f32, mask, params["Wnb_T"], params["Ws_T"], params["b"],
      scale1, shift1)

    # --- epilogue (bn2 two-pass stats + residual + softplus): N*A elems, XLA fuses ---
    nbr_sumed = sumed[:N, :A]
    mu2 = jnp.mean(nbr_sumed, axis=0)
    var2 = jnp.mean(jnp.square(nbr_sumed - mu2), axis=0)
    inv2 = jax.lax.rsqrt(var2 + EPS)
    out = jax.nn.softplus(atom_in + (nbr_sumed - mu2) * inv2 * params["g2"]
                          + params["be2"])
    return out


# ----------------------------- pure-JAX reference ----------------------------
def reference(atom_in, nbr_fea, nbr_idx, pad, W, b, g1, be1, g2, be2,
              mm_dtype=jnp.float32):
    N, M = nbr_idx.shape
    A = atom_in.shape[1]
    atom_nbr = atom_in[nbr_idx]
    total = jnp.concatenate(
        [jnp.broadcast_to(atom_in[:, None, :], (N, M, A)), atom_nbr, nbr_fea], axis=2)
    gated = jnp.dot(total.reshape(N * M, -1).astype(mm_dtype), W.T.astype(mm_dtype),
                    preferred_element_type=jnp.float32) + b
    mflat = pad.reshape(-1)
    cnt = jnp.sum(mflat)
    mean = jnp.sum(gated * mflat[:, None], axis=0) / cnt
    var = jnp.sum(((gated - mean) ** 2) * mflat[:, None], axis=0) / cnt
    normed = (gated - mean) / jnp.sqrt(var + EPS) * g1 + be1
    gated = jnp.where(mflat[:, None] == 1.0, normed, gated).reshape(N, M, 2 * A)
    nf = jax.nn.sigmoid(gated[..., :A])
    nc = jax.nn.softplus(gated[..., A:])
    nbr_sumed = jnp.sum(nf * nc * pad[:, :, None], axis=1)
    mean2 = jnp.mean(nbr_sumed, axis=0)
    var2 = jnp.mean((nbr_sumed - mean2) ** 2, axis=0)
    ns = (nbr_sumed - mean2) / jnp.sqrt(var2 + EPS) * g2 + be2
    return jax.nn.softplus(atom_in + ns)


if __name__ == "__main__":
    A, Bf, N, M = 64, 32, 16, 8          # atom_fea_len, nbr_fea_len, N atoms, M nbrs
    Din, Dout = 2 * A + Bf, 2 * A
    key = jax.random.PRNGKey(0)
    ks = jax.random.split(key, 10)

    atom_in = jax.random.normal(ks[0], (N, A), jnp.float32)
    nbr_fea = jax.random.normal(ks[1], (N, M, Bf), jnp.float32)
    nbr_idx = jax.random.randint(ks[2], (N, M), 0, N)
    valid = 2 + (jnp.arange(N) % (M - 1))                      # 2..M real neighbors
    pad = (jnp.arange(M)[None, :] < valid[:, None]).astype(jnp.float32)

    kw = 1.0 / np.sqrt(Din)
    W = jax.random.uniform(ks[3], (Dout, Din), jnp.float32, -kw, kw)   # fc_full.weight
    b = jax.random.uniform(ks[4], (Dout,), jnp.float32, -kw, kw)       # fc_full.bias
    g1 = jax.random.uniform(ks[5], (Dout,), jnp.float32, 0.5, 1.5)     # bn1.weight
    be1 = jax.random.uniform(ks[6], (Dout,), jnp.float32, -0.1, 0.1)   # bn1.bias
    g2 = jax.random.uniform(ks[7], (A,), jnp.float32, 0.5, 1.5)        # bn2.weight
    be2 = jax.random.uniform(ks[8], (A,), jnp.float32, -0.1, 0.1)      # bn2.bias

    params = prepare_params(W, b, g1, be1, g2, be2, A)   # one-time weight split/cast
    fwd = jax.jit(conv_layer_forward, static_argnames=("tna",))

    out = jax.block_until_ready(fwd(atom_in, nbr_fea, nbr_idx, pad, params))

    # Tight check vs a reference that also uses bf16 matmul operands (isolates
    # everything except the intentional bf16 MXU cast) ...
    ref_bf16 = jax.block_until_ready(
        reference(atom_in, nbr_fea, nbr_idx, pad, W, b, g1, be1, g2, be2,
                  mm_dtype=jnp.bfloat16))
    np.testing.assert_allclose(np.asarray(out), np.asarray(ref_bf16),
                               rtol=1e-2, atol=1e-2)
    # ... and a looser check vs the exact f32 module semantics (bf16 operands are
    # an intentional precision trade-off per the perf review).
    ref_f32 = jax.block_until_ready(
        reference(atom_in, nbr_fea, nbr_idx, pad, W, b, g1, be1, g2, be2))
    np.testing.assert_allclose(np.asarray(out), np.asarray(ref_f32),
                               rtol=3e-2, atol=3e-2)
    print("KERNEL_OK")
</pallas_src>

<mosaic_0001>
module attributes {stable_mosaic.version = 11 : i64} {
  func.func @_fc_stats_kernel(%arg0: i32, %arg1: memref<64x96xbf16, #tpu.memory_space<vmem>>, %arg2: memref<8x64xf32, #tpu.memory_space<vmem>>, %arg3: memref<8x8x1xf32, #tpu.memory_space<vmem>>, %arg4: memref<96x128xbf16, #tpu.memory_space<vmem>>, %arg5: memref<64x128xbf16, #tpu.memory_space<vmem>>, %arg6: memref<1x128xf32, #tpu.memory_space<vmem>>, %arg7: memref<1x8x128xf32, #tpu.memory_space<vmem>>) attributes {dimension_semantics = [#tpu.dimension_semantics<parallel>], iteration_bounds = array<i64: 2>, scalar_prefetch = 0 : i64, scratch_operands = 0 : i64, tpu.core_type = #tpu.core_type<tc>, window_params = [{transform_indices = @transform_0, window_bounds = array<i64: 64, 96>}, {transform_indices = @transform_1, window_bounds = array<i64: 8, 64>}, {transform_indices = @transform_2, window_bounds = array<i64: 8, 8, 1>}, {pipeline_mode = #tpu.pipeline_mode<synchronous>, transform_indices = @transform_3, window_bounds = array<i64: 96, 128>}, {pipeline_mode = #tpu.pipeline_mode<synchronous>, transform_indices = @transform_4, window_bounds = array<i64: 64, 128>}, {pipeline_mode = #tpu.pipeline_mode<synchronous>, transform_indices = @transform_5, window_bounds = array<i64: 1, 128>}, {transform_indices = @transform_6, window_bounds = array<i64: 1, 8, 128>}]} {
    %c0 = arith.constant 0 : index
    %c0_0 = arith.constant 0 : index
    %0 = vector.load %arg1[%c0, %c0_0] : memref<64x96xbf16, #tpu.memory_space<vmem>>, vector<64x96xbf16>
    %c0_1 = arith.constant 0 : index
    %c0_2 = arith.constant 0 : index
    %1 = vector.load %arg4[%c0_1, %c0_2] : memref<96x128xbf16, #tpu.memory_space<vmem>>, vector<96x128xbf16>
    %cst = arith.constant dense<0.000000e+00> : vector<64x128xf32>
    %2 = tpu.matmul %0, %1, %cst {dimension_numbers = #tpu.dot_dimension_numbers<[1], [0], [0], [1], [0, 0, 1, 1], [], []>} : vector<64x96xbf16>, vector<96x128xbf16>, vector<64x128xf32> -> vector<64x128xf32>
    %c0_3 = arith.constant 0 : index
    %c0_4 = arith.constant 0 : index
    %3 = vector.load %arg2[%c0_3, %c0_4] : memref<8x64xf32, #tpu.memory_space<vmem>>, vector<8x64xf32>
    %4 = arith.truncf %3 : vector<8x64xf32> to vector<8x64xbf16>
    %c0_5 = arith.constant 0 : index
    %c0_6 = arith.constant 0 : index
    %5 = vector.load %arg5[%c0_5, %c0_6] : memref<64x128xbf16, #tpu.memory_space<vmem>>, vector<64x128xbf16>
    %cst_7 = arith.constant dense<0.000000e+00> : vector<8x128xf32>
    %6 = tpu.matmul %4, %5, %cst_7 {dimension_numbers = #tpu.dot_dimension_numbers<[1], [0], [0], [1], [0, 0, 1, 1], [], []>} : vector<8x64xbf16>, vector<64x128xbf16>, vector<8x128xf32> -> vector<8x128xf32>
    %c0_8 = arith.constant 0 : index
    %c0_9 = arith.constant 0 : index
    %7 = vector.load %arg6[%c0_8, %c0_9] : memref<1x128xf32, #tpu.memory_space<vmem>>, vector<1x128xf32>
    %8 = vector.broadcast %7 : vector<1x128xf32> to vector<8x128xf32>
    %9 = arith.addf %6, %8 : vector<8x128xf32>
    %10 = vector.shape_cast %2 : vector<64x128xf32> to vector<8x8x128xf32>
    %11 = vector.shape_cast %9 : vector<8x128xf32> to vector<8x1x128xf32>
    %12 = vector.broadcast %11 : vector<8x1x128xf32> to vector<8x8x128xf32>
    %13 = arith.addf %10, %12 : vector<8x8x128xf32>
    %14 = vector.shape_cast %13 : vector<8x8x128xf32> to vector<64x128xf32>
    %c0_10 = arith.constant 0 : index
    %c0_11 = arith.constant 0 : index
    %c0_12 = arith.constant 0 : index
    %15 = vector.load %arg3[%c0_10, %c0_11, %c0_12] : memref<8x8x1xf32, #tpu.memory_space<vmem>>, vector<8x8x1xf32>
    %16 = vector.broadcast %15 : vector<8x8x1xf32> to vector<8x8x128xf32>
    %17 = arith.mulf %13, %16 : vector<8x8x128xf32>
    %18 = vector.shape_cast %17 : vector<8x8x128xf32> to vector<64x128xf32>
    %cst_13 = arith.constant dense<0.000000e+00> : vector<128xf32>
    %19 = vector.multi_reduction <add>, %18, %cst_13 [0] : vector<64x128xf32> to vector<128xf32>
    %20 = vector.shape_cast %19 : vector<128xf32> to vector<1x128xf32>
    %21 = arith.mulf %18, %14 : vector<64x128xf32>
    %cst_14 = arith.constant dense<0.000000e+00> : vector<128xf32>
    %22 = vector.multi_reduction <add>, %21, %cst_14 [0] : vector<64x128xf32> to vector<128xf32>
    %23 = vector.shape_cast %22 : vector<128xf32> to vector<1x128xf32>
    %24 = tpu.iota {dimensions = array<i32: 0>} : vector<8x128xi32>
    %c0_i32 = arith.constant 0 : i32
    %25 = vector.broadcast %c0_i32 : i32 to vector<8x128xi32>
    %26 = arith.cmpi eq, %24, %25 : vector<8x128xi32>
    %27 = vector.shape_cast %20 : vector<1x128xf32> to vector<1x128xf32>
    %28 = vector.broadcast %27 : vector<1x128xf32> to vector<8x128xf32>
    %c1_i32 = arith.constant 1 : i32
    %29 = vector.broadcast %c1_i32 : i32 to vector<8x128xi32>
    %30 = arith.cmpi eq, %24, %29 : vector<8x128xi32>
    %31 = vector.shape_cast %23 : vector<1x128xf32> to vector<1x128xf32>
    %32 = vector.broadcast %31 : vector<1x128xf32> to vector<8x128xf32>
    %cst_15 = arith.constant 0.000000e+00 : f32
    %33 = vector.broadcast %cst_15 : f32 to vector<8x128xf32>
    %34 = arith.select %30, %32, %33 : vector<8x128xi1>, vector<8x128xf32>
    %35 = arith.select %26, %28, %34 : vector<8x128xi1>, vector<8x128xf32>
    %36 = vector.shape_cast %35 : vector<8x128xf32> to vector<1x8x128xf32>
    %c0_16 = arith.constant 0 : index
    %c0_17 = arith.constant 0 : index
    %c0_18 = arith.constant 0 : index
    %37 = vector.load %arg7[%c0_16, %c0_17, %c0_18] : memref<1x8x128xf32, #tpu.memory_space<vmem>>, vector<1x8x128xf32>
    tpu.vector_store %arg7[%c0_16, %c0_17, %c0_18], %36 {strides = array<i32>} : memref<1x8x128xf32, #tpu.memory_space<vmem>>, vector<1x8x128xf32>,
    return
  }
  func.func @transform_0(%arg0: i32) -> (i32, i32) {
    %c0_i32 = arith.constant 0 : i32
    %c0_i32_0 = arith.constant 0 : i32
    return %arg0, %c0_i32 : i32, i32
  }
  func.func @transform_1(%arg0: i32) -> (i32, i32) {
    %c0_i32 = arith.constant 0 : i32
    %c0_i32_0 = arith.constant 0 : i32
    return %arg0, %c0_i32 : i32, i32
  }
  func.func @transform_2(%arg0: i32) -> (i32, i32, i32) {
    %c0_i32 = arith.constant 0 : i32
    %c0_i32_0 = arith.constant 0 : i32
    %c0_i32_1 = arith.constant 0 : i32
    return %arg0, %c0_i32, %c0_i32_0 : i32, i32, i32
  }
  func.func @transform_3(%arg0: i32) -> (i32, i32) {
    %c0_i32 = arith.constant 0 : i32
    %c0_i32_0 = arith.constant 0 : i32
    %c0_i32_1 = arith.constant 0 : i32
    return %c0_i32, %c0_i32_0 : i32, i32
  }
  func.func @transform_4(%arg0: i32) -> (i32, i32) {
    %c0_i32 = arith.constant 0 : i32
    %c0_i32_0 = arith.constant 0 : i32
    %c0_i32_1 = arith.constant 0 : i32
    return %c0_i32, %c0_i32_0 : i32, i32
  }
  func.func @transform_5(%arg0: i32) -> (i32, i32) {
    %c0_i32 = arith.constant 0 : i32
    %c0_i32_0 = arith.constant 0 : i32
    %c0_i32_1 = arith.constant 0 : i32
    return %c0_i32, %c0_i32_0 : i32, i32
  }
  func.func @transform_6(%arg0: i32) -> (i32, i32, i32) {
    %c0_i32 = arith.constant 0 : i32
    %c0_i32_0 = arith.constant 0 : i32
    %c0_i32_1 = arith.constant 0 : i32
    return %arg0, %c0_i32, %c0_i32_0 : i32, i32, i32
  }
}

module attributes {stable_mosaic.version = 11 : i64} {
  func.func @_gate_reduce_kernel(%arg0: i32, %arg1: memref<64x96xbf16, #tpu.memory_space<vmem>>, %arg2: memref<8x64xf32, #tpu.memory_space<vmem>>, %arg3: memref<8x8x1xf32, #tpu.memory_space<vmem>>, %arg4: memref<96x128xbf16, #tpu.memory_space<vmem>>, %arg5: memref<64x128xbf16, #tpu.memory_space<vmem>>, %arg6: memref<1x128xf32, #tpu.memory_space<vmem>>, %arg7: memref<1x128xf32, #tpu.memory_space<vmem>>, %arg8: memref<1x128xf32, #tpu.memory_space<vmem>>, %arg9: memref<8x128xf32, #tpu.memory_space<vmem>>) attributes {dimension_semantics = [#tpu.dimension_semantics<parallel>], iteration_bounds = array<i64: 2>, scalar_prefetch = 0 : i64, scratch_operands = 0 : i64, tpu.core_type = #tpu.core_type<tc>, window_params = [{transform_indices = @transform_0, window_bounds = array<i64: 64, 96>}, {transform_indices = @transform_1, window_bounds = array<i64: 8, 64>}, {transform_indices = @transform_2, window_bounds = array<i64: 8, 8, 1>}, {pipeline_mode = #tpu.pipeline_mode<synchronous>, transform_indices = @transform_3, window_bounds = array<i64: 96, 128>}, {pipeline_mode = #tpu.pipeline_mode<synchronous>, transform_indices = @transform_4, window_bounds = array<i64: 64, 128>}, {pipeline_mode = #tpu.pipeline_mode<synchronous>, transform_indices = @transform_5, window_bounds = array<i64: 1, 128>}, {pipeline_mode = #tpu.pipeline_mode<synchronous>, transform_indices = @transform_6, window_bounds = array<i64: 1, 128>}, {pipeline_mode = #tpu.pipeline_mode<synchronous>, transform_indices = @transform_7, window_bounds = array<i64: 1, 128>}, {transform_indices = @transform_8, window_bounds = array<i64: 8, 128>}]} {
    %c0 = arith.constant 0 : index
    %c0_0 = arith.constant 0 : index
    %0 = vector.load %arg1[%c0, %c0_0] : memref<64x96xbf16, #tpu.memory_space<vmem>>, vector<64x96xbf16>
    %c0_1 = arith.constant 0 : index
    %c0_2 = arith.constant 0 : index
    %1 = vector.load %arg4[%c0_1, %c0_2] : memref<96x128xbf16, #tpu.memory_space<vmem>>, vector<96x128xbf16>
    %cst = arith.constant dense<0.000000e+00> : vector<64x128xf32>
    %2 = tpu.matmul %0, %1, %cst {dimension_numbers = #tpu.dot_dimension_numbers<[1], [0], [0], [1], [0, 0, 1, 1], [], []>} : vector<64x96xbf16>, vector<96x128xbf16>, vector<64x128xf32> -> vector<64x128xf32>
    %c0_3 = arith.constant 0 : index
    %c0_4 = arith.constant 0 : index
    %3 = vector.load %arg2[%c0_3, %c0_4] : memref<8x64xf32, #tpu.memory_space<vmem>>, vector<8x64xf32>
    %4 = arith.truncf %3 : vector<8x64xf32> to vector<8x64xbf16>
    %c0_5 = arith.constant 0 : index
    %c0_6 = arith.constant 0 : index
    %5 = vector.load %arg5[%c0_5, %c0_6] : memref<64x128xbf16, #tpu.memory_space<vmem>>, vector<64x128xbf16>
    %cst_7 = arith.constant dense<0.000000e+00> : vector<8x128xf32>
    %6 = tpu.matmul %4, %5, %cst_7 {dimension_numbers = #tpu.dot_dimension_numbers<[1], [0], [0], [1], [0, 0, 1, 1], [], []>} : vector<8x64xbf16>, vector<64x128xbf16>, vector<8x128xf32> -> vector<8x128xf32>
    %c0_8 = arith.constant 0 : index
    %c0_9 = arith.constant 0 : index
    %7 = vector.load %arg6[%c0_8, %c0_9] : memref<1x128xf32, #tpu.memory_space<vmem>>, vector<1x128xf32>
    %8 = vector.broadcast %7 : vector<1x128xf32> to vector<8x128xf32>
    %9 = arith.addf %6, %8 : vector<8x128xf32>
    %10 = vector.shape_cast %2 : vector<64x128xf32> to vector<8x8x128xf32>
    %11 = vector.shape_cast %9 : vector<8x128xf32> to vector<8x1x128xf32>
    %12 = vector.broadcast %11 : vector<8x1x128xf32> to vector<8x8x128xf32>
    %13 = arith.addf %10, %12 : vector<8x8x128xf32>
    %14 = vector.shape_cast %13 : vector<8x8x128xf32> to vector<64x128xf32>
    %c0_10 = arith.constant 0 : index
    %c0_11 = arith.constant 0 : index
    %15 = vector.load %arg7[%c0_10, %c0_11] : memref<1x128xf32, #tpu.memory_space<vmem>>, vector<1x128xf32>
    %16 = vector.broadcast %15 : vector<1x128xf32> to vector<64x128xf32>
    %17 = arith.mulf %14, %16 : vector<64x128xf32>
    %c0_12 = arith.constant 0 : index
    %c0_13 = arith.constant 0 : index
    %18 = vector.load %arg8[%c0_12, %c0_13] : memref<1x128xf32, #tpu.memory_space<vmem>>, vector<1x128xf32>
    %19 = vector.broadcast %18 : vector<1x128xf32> to vector<64x128xf32>
    %20 = arith.addf %17, %19 : vector<64x128xf32>
    %21 = math.absf %20 : vector<64x128xf32>
    %cst_14 = arith.constant 0.000000e+00 : f32
    %22 = vector.broadcast %cst_14 : f32 to vector<64x128xf32>
    %23 = arith.subf %22, %21 : vector<64x128xf32>
    %24 = math.exp %23 : vector<64x128xf32>
    %cst_15 = arith.constant 1.000000e+00 : f32
    %25 = vector.broadcast %cst_15 : f32 to vector<64x128xf32>
    %26 = arith.addf %25, %24 : vector<64x128xf32>
    %27 = tpu.reciprocal %26 {approx = true} : vector<64x128xf32> -> vector<64x128xf32>
    %cst_16 = arith.constant 0.000000e+00 : f32
    %28 = vector.broadcast %cst_16 : f32 to vector<64x128xf32>
    %29 = arith.cmpf oge, %20, %28 : vector<64x128xf32>
    %cst_17 = arith.constant 1.000000e+00 : f32
    %30 = vector.broadcast %cst_17 : f32 to vector<64x128xf32>
    %31 = arith.select %29, %30, %24 : vector<64x128xi1>, vector<64x128xf32>
    %32 = arith.mulf %31, %27 : vector<64x128xf32>
    %cst_18 = arith.constant 0.000000e+00 : f32
    %33 = vector.broadcast %cst_18 : f32 to vector<64x128xf32>
    %34 = arith.maximumf %20, %33 : vector<64x128xf32>
    %35 = math.log1p %24 : vector<64x128xf32>
    %36 = arith.addf %34, %35 : vector<64x128xf32>
    %c64_i32 = arith.constant 64 : i32
    %37 = tpu.dynamic_rotate %36 by %c64_i32 dim 1 : vector<64x128xf32>, i32 -> vector<64x128xf32>
    %38 = arith.mulf %32, %37 : vector<64x128xf32>
    %39 = vector.shape_cast %38 : vector<64x128xf32> to vector<8x8x128xf32>
    %c0_19 = arith.constant 0 : index
    %c0_20 = arith.constant 0 : index
    %c0_21 = arith.constant 0 : index
    %40 = vector.load %arg3[%c0_19, %c0_20, %c0_21] : memref<8x8x1xf32, #tpu.memory_space<vmem>>, vector<8x8x1xf32>
    %41 = vector.broadcast %40 : vector<8x8x1xf32> to vector<8x8x128xf32>
    %42 = arith.mulf %39, %41 : vector<8x8x128xf32>
    %cst_22 = arith.constant dense<0.000000e+00> : vector<8x128xf32>
    %43 = vector.multi_reduction <add>, %42, %cst_22 [1] : vector<8x8x128xf32> to vector<8x128xf32>
    %c0_23 = arith.constant 0 : index
    %c0_24 = arith.constant 0 : index
    %44 = vector.load %arg9[%c0_23, %c0_24] : memref<8x128xf32, #tpu.memory_space<vmem>>, vector<8x128xf32>
    tpu.vector_store %arg9[%c0_23, %c0_24], %43 {strides = array<i32>} : memref<8x128xf32, #tpu.memory_space<vmem>>, vector<8x128xf32>,
    return
  }
  func.func @transform_0(%arg0: i32) -> (i32, i32) {
    %c0_i32 = arith.constant 0 : i32
    %c0_i32_0 = arith.constant 0 : i32
    return %arg0, %c0_i32 : i32, i32
  }
  func.func @transform_1(%arg0: i32) -> (i32, i32) {
    %c0_i32 = arith.constant 0 : i32
    %c0_i32_0 = arith.constant 0 : i32
    return %arg0, %c0_i32 : i32, i32
  }
  func.func @transform_2(%arg0: i32) -> (i32, i32, i32) {
    %c0_i32 = arith.constant 0 : i32
    %c0_i32_0 = arith.constant 0 : i32
    %c0_i32_1 = arith.constant 0 : i32
    return %arg0, %c0_i32, %c0_i32_0 : i32, i32, i32
  }
  func.func @transform_3(%arg0: i32) -> (i32, i32) {
    %c0_i32 = arith.constant 0 : i32
    %c0_i32_0 = arith.constant 0 : i32
    %c0_i32_1 = arith.constant 0 : i32
    return %c0_i32, %c0_i32_0 : i32, i32
  }
  func.func @transform_4(%arg0: i32) -> (i32, i32) {
    %c0_i32 = arith.constant 0 : i32
    %c0_i32_0 = arith.constant 0 : i32
    %c0_i32_1 = arith.constant 0 : i32
    return %c0_i32, %c0_i32_0 : i32, i32
  }
  func.func @transform_5(%arg0: i32) -> (i32, i32) {
    %c0_i32 = arith.constant 0 : i32
    %c0_i32_0 = arith.constant 0 : i32
    %c0_i32_1 = arith.constant 0 : i32
    return %c0_i32, %c0_i32_0 : i32, i32
  }
  func.func @transform_6(%arg0: i32) -> (i32, i32) {
    %c0_i32 = arith.constant 0 : i32
    %c0_i32_0 = arith.constant 0 : i32
    %c0_i32_1 = arith.constant 0 : i32
    return %c0_i32, %c0_i32_0 : i32, i32
  }
  func.func @transform_7(%arg0: i32) -> (i32, i32) {
    %c0_i32 = arith.constant 0 : i32
    %c0_i32_0 = arith.constant 0 : i32
    %c0_i32_1 = arith.constant 0 : i32
    return %c0_i32, %c0_i32_0 : i32, i32
  }
  func.func @transform_8(%arg0: i32) -> (i32, i32) {
    %c0_i32 = arith.constant 0 : i32
    %c0_i32_0 = arith.constant 0 : i32
    return %arg0, %c0_i32 : i32, i32
  }
}

</mosaic_0001>

<llo_original>
// kernel: conv_layer_forward.2
$region0: #{conv_layer_forward.2}
  #allocation0 [shape = 'u32[]', space=smem, size = 0x4, offset = 0x4, fixed_abs, tag = 'smem constant byte address 0x4 - core index']
  #allocation1 [shape = 'u32[72,128]{1,0:T(1,128)}', space=vmem, size = 0x9000, scoped, tag = 'internal scratch']
  %s0 = inlined_call_operand.vmem [shape: bf16[128,96], index: 0, kind: input, shape index: {}]
  %s1 = inlined_call_operand.vmem [shape: f32[16,64], index: 1, kind: input, shape index: {}]
  %s2 = inlined_call_operand.vmem [shape: f32[16,8,1], index: 2, kind: input, shape index: {}]
  %s3 = inlined_call_operand.vmem [shape: bf16[96,128], index: 3, kind: input, shape index: {}]
  %s4 = inlined_call_operand.vmem [shape: bf16[64,128], index: 4, kind: input, shape index: {}]
  %s5 = inlined_call_operand.vmem [shape: f32[1,128], index: 5, kind: input, shape index: {}]
  %s6 = inlined_call_operand.vmem [shape: f32[2,8,128], index: 6, kind: output, shape index: {}]
  %s7 = sld [smem:[#allocation0]]
  $region57: #{conv_layer_forward.2} parent=0
    _
  %s9 = ssub.s32 1, %s7
  %s10 = scalar_select 0, %s9, %s7
  loop: start=0, step=1, limit=4
  $region2: #{conv_layer_forward.2} parent=0 // loop_pre_header
    _
  $region3: #{conv_layer_forward.2} parent=0 // loop_header
    %s12 = sphi 0, %s16
    %p13 = scmp.ge.s32.totalorder %s12, 4
    %s22 = sphi 0, %s24
    %s25 = sphi 0, %s22
    %s26 = sphi 0, %s25
    %s42 = sphi 0, %s26
    %s48 = sphi 0, %s50
    %s51 = sphi 0, %s48
    %s52 = sphi 0, %s51
    %s68 = sphi 0, %s52
    %s74 = sphi 0, %s76
    %s77 = sphi 0, %s74
    %s78 = sphi 0, %s77
    %s94 = sphi 0, %s78
    %s98 = sphi 0, %s98
    %s100 = sphi 0, %s98
    %s101 = sphi 0, %s100
    %s115 = sphi 0, %s101
    %s119 = sphi 0, %s119
    %s121 = sphi 0, %s119
    %s122 = sphi 0, %s121
    %s136 = sphi 0, %s122
    %s140 = sphi 0, %s140
    %s142 = sphi 0, %s140
    %s143 = sphi 0, %s142
    %s157 = sphi 0, %s143
    %s163 = sphi 0, %s165
    %s166 = sphi 0, %s163
    %s167 = sphi 0, %s166
    %s183 = sphi 0, %s167
  $region4: #{conv_layer_forward.2} parent=0 // loop_header_branch
    %15 = sbr.rel (%p13) target = $region8
  $region5: #{conv_layer_forward.2} parent=0 // loop_body
    %s17 = ssub.s32 %s12, 1
    %s18 = ssub.s32 %s12, 2
    %s19 = sadd.s32 %s12, 1
    %s20 = ssub.s32 %s12, %s19
    %p21 = scmp.eq.s32.totalorder %s20, 0
    %s23 = sadd.s32 %s22, 1
    %s24 = scalar_select %p21, %s22, %s23
    %p27 = pneg %p21
    %p28 = scmp.eq.s32.totalorder %s12, 1
    %p29 = por %p27, %p28
    %p30 = scmp.ne.s32.totalorder %s22, %s25
    %p31 = scmp.eq.s32.totalorder %s12, 0
    %p32 = por %p30, %p31
    %p33 = scmp.ne.s32.totalorder %s22, %s25
    %p34 = scmp.eq.s32.totalorder %s17, 1
    %p35 = por %p33, %p34
    %p36 = scmp.ne.s32.totalorder %s25, %s26
    %p37 = scmp.eq.s32.totalorder %s17, 0
    %p38 = por %p36, %p37
    %p39 = scmp.ne.s32.totalorder %s25, %s26
    %p40 = scmp.eq.s32.totalorder %s18, 1
    %p41 = por %p39, %p40
    %p43 = scmp.ne.s32.totalorder %s26, %s42
    %p44 = scmp.eq.s32.totalorder %s18, 0
    %p45 = por %p43, %p44
    %s46 = ssub.s32 %s12, %s19
    %p47 = scmp.eq.s32.totalorder %s46, 0
    %s49 = sadd.s32 %s48, 1
    %s50 = scalar_select %p47, %s48, %s49
    %p53 = pneg %p47
    %p54 = scmp.eq.s32.totalorder %s12, 1
    %p55 = por %p53, %p54
    %p56 = scmp.ne.s32.totalorder %s48, %s51
    %p57 = scmp.eq.s32.totalorder %s12, 0
    %p58 = por %p56, %p57
    %p59 = scmp.ne.s32.totalorder %s48, %s51
    %p60 = scmp.eq.s32.totalorder %s17, 1
    %p61 = por %p59, %p60
    %p62 = scmp.ne.s32.totalorder %s51, %s52
    %p63 = scmp.eq.s32.totalorder %s17, 0
    %p64 = por %p62, %p63
    %p65 = scmp.ne.s32.totalorder %s51, %s52
    %p66 = scmp.eq.s32.totalorder %s18, 1
    %p67 = por %p65, %p66
    %p69 = scmp.ne.s32.totalorder %s52, %s68
    %p70 = scmp.eq.s32.totalorder %s18, 0
    %p71 = por %p69, %p70
    %s72 = ssub.s32 %s12, %s19
    %p73 = scmp.eq.s32.totalorder %s72, 0
    %s75 = sadd.s32 %s74, 1
    %s76 = scalar_select %p73, %s74, %s75
    %p79 = pneg %p73
    %p80 = scmp.eq.s32.totalorder %s12, 1
    %p81 = por %p79, %p80
    %p82 = scmp.ne.s32.totalorder %s74, %s77
    %p83 = scmp.eq.s32.totalorder %s12, 0
    %p84 = por %p82, %p83
    %p85 = scmp.ne.s32.totalorder %s74, %s77
    %p86 = scmp.eq.s32.totalorder %s17, 1
    %p87 = por %p85, %p86
    %p88 = scmp.ne.s32.totalorder %s77, %s78
    %p89 = scmp.eq.s32.totalorder %s17, 0
    %p90 = por %p88, %p89
    %p91 = scmp.ne.s32.totalorder %s77, %s78
    %p92 = scmp.eq.s32.totalorder %s18, 1
    %p93 = por %p91, %p92
    %p95 = scmp.ne.s32.totalorder %s78, %s94
    %p96 = scmp.eq.s32.totalorder %s18, 0
    %p97 = por %p95, %p96
    %s99 = sadd.s32 %s98, 1
    %p102 = scmp.eq.s32.totalorder %s12, 1
    %p103 = scmp.ne.s32.totalorder %s98, %s100
    %p104 = scmp.eq.s32.totalorder %s12, 0
    %p105 = por %p103, %p104
    %p106 = scmp.ne.s32.totalorder %s98, %s100
    %p107 = scmp.eq.s32.totalorder %s17, 1
    %p108 = por %p106, %p107
    %p109 = scmp.ne.s32.totalorder %s100, %s101
    %p110 = scmp.eq.s32.totalorder %s17, 0
    %p111 = por %p109, %p110
    %p112 = scmp.ne.s32.totalorder %s100, %s101
    %p113 = scmp.eq.s32.totalorder %s18, 1
    %p114 = por %p112, %p113
    %p116 = scmp.ne.s32.totalorder %s101, %s115
    %p117 = scmp.eq.s32.totalorder %s18, 0
    %p118 = por %p116, %p117
    %s120 = sadd.s32 %s119, 1
    %p123 = scmp.eq.s32.totalorder %s12, 1
    %p124 = scmp.ne.s32.totalorder %s119, %s121
    %p125 = scmp.eq.s32.totalorder %s12, 0
    %p126 = por %p124, %p125
    %p127 = scmp.ne.s32.totalorder %s119, %s121
    %p128 = scmp.eq.s32.totalorder %s17, 1
    %p129 = por %p127, %p128
    %p130 = scmp.ne.s32.totalorder %s121, %s122
    %p131 = scmp.eq.s32.totalorder %s17, 0
    %p132 = por %p130, %p131
    %p133 = scmp.ne.s32.totalorder %s121, %s122
    %p134 = scmp.eq.s32.totalorder %s18, 1
    %p135 = por %p133, %p134
    %p137 = scmp.ne.s32.totalorder %s122, %s136
    %p138 = scmp.eq.s32.totalorder %s18, 0
    %p139 = por %p137, %p138
    %s141 = sadd.s32 %s140, 1
    %p144 = scmp.eq.s32.totalorder %s12, 1
    %p145 = scmp.ne.s32.totalorder %s140, %s142
    %p146 = scmp.eq.s32.totalorder %s12, 0
    %p147 = por %p145, %p146
    %p148 = scmp.ne.s32.totalorder %s140, %s142
    %p149 = scmp.eq.s32.totalorder %s17, 1
    %p150 = por %p148, %p149
    %p151 = scmp.ne.s32.totalorder %s142, %s143
    %p152 = scmp.eq.s32.totalorder %s17, 0
    %p153 = por %p151, %p152
    %p154 = scmp.ne.s32.totalorder %s142, %s143
    %p155 = scmp.eq.s32.totalorder %s18, 1
    %p156 = por %p154, %p155
    %p158 = scmp.ne.s32.totalorder %s143, %s157
    %p159 = scmp.eq.s32.totalorder %s18, 0
    %p160 = por %p158, %p159
    %s161 = ssub.s32 %s12, %s19
    %p162 = scmp.eq.s32.totalorder %s161, 0
    %s164 = sadd.s32 %s163, 1
    %s165 = scalar_select %p162, %s163, %s164
    %p168 = pneg %p162
    %p169 = scmp.eq.s32.totalorder %s12, 1
    %p170 = por %p168, %p169
    %p171 = scmp.ne.s32.totalorder %s163, %s166
    %p172 = scmp.eq.s32.totalorder %s12, 0
    %p173 = por %p171, %p172
    %p174 = scmp.ne.s32.totalorder %s163, %s166
    %p175 = scmp.eq.s32.totalorder %s17, 1
    %p176 = por %p174, %p175
    %p177 = scmp.ne.s32.totalorder %s166, %s167
    %p178 = scmp.eq.s32.totalorder %s17, 0
    %p179 = por %p177, %p178
    %p180 = scmp.ne.s32.totalorder %s166, %s167
    %p181 = scmp.eq.s32.totalorder %s18, 1
    %p182 = por %p180, %p181
    %p184 = scmp.ne.s32.totalorder %s167, %s183
    %p185 = scmp.eq.s32.totalorder %s18, 0
    %p186 = por %p184, %p185
    %p187 = scmp.le.s32.totalorder 1, %s12
    %p188 = scmp.lt.s32.totalorder %s12, 3
    %p189 = pnand %p187, %p188
    %p190 = pneg %p189
    // Predicated region
    $region9: #{conv_layer_forward.2} parent=5 // pred_check
      _
    $region10: #{conv_layer_forward.2} parent=5 // pred_check_branch
      %192 = sbr.rel (%p189) target = $region12
    $region11: #{conv_layer_forward.2} parent=5 // pred_region
      %s193 = ssub.s32 %s12, 1
      // Predicated region
      $region13: #{conv_layer_forward.2} parent=11 // pred_check
        %p194 = pneg %p111
      $region14: #{conv_layer_forward.2} parent=11 // pred_check_branch
        %196 = sbr.rel (%p194) target = $region16
      $region15: #{conv_layer_forward.2} parent=11 // pred_region
        _
      $region16: #{conv_layer_forward.2} parent=11 // pred_fallthru
        _
      // Predicated region
      $region17: #{conv_layer_forward.2} parent=11 // pred_check
        %p197 = pneg %p132
      $region18: #{conv_layer_forward.2} parent=11 // pred_check_branch
        %199 = sbr.rel (%p197) target = $region20
      $region19: #{conv_layer_forward.2} parent=11 // pred_region
        _
      $region20: #{conv_layer_forward.2} parent=11 // pred_fallthru
        _
      // Predicated region
      $region21: #{conv_layer_forward.2} parent=11 // pred_check
        %p200 = pneg %p153
      $region22: #{conv_layer_forward.2} parent=11 // pred_check_branch
        %202 = sbr.rel (%p200) target = $region24
      $region23: #{conv_layer_forward.2} parent=11 // pred_region
        _
      $region24: #{conv_layer_forward.2} parent=11 // pred_fallthru
        _
    $region12: #{conv_layer_forward.2} parent=5 // pred_fallthru
      _
    %p203 = scmp.lt.s32.totalorder %s12, 2
    // Predicated region
    $region25: #{conv_layer_forward.2} parent=5 // pred_check
      %p204 = pneg %p203
    $region26: #{conv_layer_forward.2} parent=5 // pred_check_branch
      %206 = sbr.rel (%p204) target = $region28
    $region27: #{conv_layer_forward.2} parent=5 // pred_region
      // Predicated region
      $region29: #{conv_layer_forward.2} parent=27 // pred_check
        %p207 = pneg %p32
      $region30: #{conv_layer_forward.2} parent=27 // pred_check_branch
        %209 = sbr.rel (%p207) target = $region32
      $region31: #{conv_layer_forward.2} parent=27 // pred_region
        %s210 = smul.u32 8, %s12
        %p211 = scmp.lt.s32.totalorder %s210, 15
        %s212 = scalar_select %p211, %s210, 15
        %s213 = smul.addr %s212, 4
        %s214 = scalar_lea.vmem %s0, %s213
        %s215 = smul.u32 8, %s12
      $region32: #{conv_layer_forward.2} parent=27 // pred_fallthru
        _
      // Predicated region
      $region33: #{conv_layer_forward.2} parent=27 // pred_check
        %p216 = pneg %p58
      $region34: #{conv_layer_forward.2} parent=27 // pred_check_branch
        %218 = sbr.rel (%p216) target = $region36
      $region35: #{conv_layer_forward.2} parent=27 // pred_region
        %p219 = scmp.lt.s32.totalorder %s12, 1
        %s220 = scalar_select %p219, %s12, 1
        %s221 = smul.addr %s220, 8
        %s222 = scalar_lea.vmem %s1, %s221
      $region36: #{conv_layer_forward.2} parent=27 // pred_fallthru
        _
      // Predicated region
      $region37: #{conv_layer_forward.2} parent=27 // pred_check
        %p223 = pneg %p84
      $region38: #{conv_layer_forward.2} parent=27 // pred_check_branch
        %225 = sbr.rel (%p223) target = $region40
      $region39: #{conv_layer_forward.2} parent=27 // pred_region
        %s226 = smul.u32 8, %s12
        %p227 = scmp.lt.s32.totalorder %s226, 15
        %s228 = scalar_select %p227, %s226, 15
        %s229 = smul.addr %s228, 8
        %s230 = scalar_lea.vmem %s2, %s229
        %s231 = smul.u32 8, %s12
      $region40: #{conv_layer_forward.2} parent=27 // pred_fallthru
        _
    $region28: #{conv_layer_forward.2} parent=5 // pred_fallthru
      _
    %p232 = scmp.le.s32.totalorder 1, %s12
    %p233 = scmp.lt.s32.totalorder %s12, 3
    %p234 = pnand %p232, %p233
    %p235 = pneg %p234
    // Predicated region
    $region41: #{conv_layer_forward.2} parent=5 // pred_check
      _
    $region42: #{conv_layer_forward.2} parent=5 // pred_check_branch
      %237 = sbr.rel (%p234) target = $region44
    $region43: #{conv_layer_forward.2} parent=5 // pred_region
      %s238 = ssub.s32 %s12, 1
      %s239 = smul.u32 8, %s17
      %p240 = scmp.lt.s32.totalorder %s239, 15
      %s241 = scalar_select %p240, %s239, 15
      %s242 = smul.addr %s241, 4
      %s243 = scalar_lea.vmem %s0, %s242
      %p244 = pneg %p38
      %p245 = pneg %p35
      %p246 = scmp.lt.s32.totalorder %s17, 1
      %s247 = scalar_select %p246, %s17, 1
      %s248 = smul.addr %s247, 8
      %s249 = scalar_lea.vmem %s1, %s248
      %p250 = pneg %p64
      %p251 = pneg %p61
      %s252 = smul.u32 8, %s17
      %p253 = scmp.lt.s32.totalorder %s252, 15
      %s254 = scalar_select %p253, %s252, 15
      %s255 = smul.addr %s254, 8
      %s256 = scalar_lea.vmem %s2, %s255
      %p257 = pneg %p90
      %p258 = pneg %p87
      %p259 = pneg %p111
      %p260 = pneg %p108
      %p261 = pneg %p132
      %p262 = pneg %p129
      %p263 = pneg %p153
      %p264 = pneg %p150
      %p265 = pneg %p179
      %p266 = pneg %p176
      %p267 = scmp.lt.s32.totalorder %s17, 1
      %s268 = scalar_select %p267, %s17, 1
      %s269 = smul.addr %s268, 8
      %s270 = scalar_lea.vmem %s6, %s269
      %s271 = smul.u32 8, %s17
      %p272 = scmp.lt.s32.totalorder %s271, 15
      %s273 = scalar_select %p272, %s271, 15
      %s274 = smul.addr %s273, 4
      %s275 = scalar_lea.vmem %s0, %s274
      %s276 = smul.u32 8, %s17
      %p277 = scmp.lt.s32.totalorder %s17, 1
      %s278 = scalar_select %p277, %s17, 1
      %s279 = smul.addr %s278, 8
      %s280 = scalar_lea.vmem %s1, %s279
      %s281 = smul.u32 8, %s17
      %p282 = scmp.lt.s32.totalorder %s281, 15
      %s283 = scalar_select %p282, %s281, 15
      %s284 = smul.addr %s283, 8
      %s285 = scalar_lea.vmem %s2, %s284
      %s286 = smul.u32 8, %s17
      %p287 = scmp.lt.s32.totalorder %s17, 1
      %s288 = scalar_select %p287, %s17, 1
      %s289 = smul.addr %s288, 8
      %s290 = scalar_lea.vmem %s6, %s289
      %v292 = vld [vmem:[%s275] sm:$0xf]
      %v293 = vld [vmem:[%s275 + $0x4] sm:$0xf]
      %v294 = vld [vmem:[%s275 + $0x8] sm:$0xf]
      %v295 = vld [vmem:[%s275 + $0xc] sm:$0xf]
      %v296 = vld [vmem:[%s275 + $0x10] sm:$0xf]
      %v297 = vld [vmem:[%s275 + $0x14] sm:$0xf]
      %v298 = vld [vmem:[%s275 + $0x18] sm:$0xf]
      %v299 = vld [vmem:[%s275 + $0x1c] sm:$0xf]
      %v300 = vld [vmem:[%s3] sm:$0xf]
      %v301 = vld [vmem:[%s3 + $0x4] sm:$0xf]
      %v302 = vld [vmem:[%s3 + $0x8] sm:$0xf]
      %v303 = vld [vmem:[%s3 + $0xc] sm:$0xf]
      %v304 = vld [vmem:[%s3 + $0x10] sm:$0xf]
      %v305 = vld [vmem:[%s3 + $0x14] sm:$0xf]
      %v306 = vld [vmem:[%s3 + $0x18] sm:$0xf]
      %v307 = vld [vmem:[%s3 + $0x1c] sm:$0xf]
      %v308 = vld [vmem:[%s3 + $0x20] sm:$0xf]
      %v309 = vld [vmem:[%s3 + $0x24] sm:$0xf]
      %v310 = vld [vmem:[%s3 + $0x28] sm:$0xf]
      %v311 = vld [vmem:[%s3 + $0x2c] sm:$0xf]
      %v320 = vunpack.c.l.b16 %v292
      %v321 = vunpack.c.l.b16 %v293
      %v322 = vunpack.c.l.b16 %v294
      %v323 = vunpack.c.l.b16 %v295
      %v324 = vunpack.c.l.b16 %v296
      %v325 = vunpack.c.l.b16 %v297
      %v326 = vunpack.c.l.b16 %v298
      %v327 = vunpack.c.l.b16 %v299
      %v328 = vpack.c.b16 %v321, %v320
      %v329 = vpack.c.b16 %v323, %v322
      %v330 = vpack.c.b16 %v325, %v324
      %v331 = vpack.c.b16 %v327, %v326
      %v344 = vunpack.c.l.b16 %v300
      %v345 = vunpack.c.l.b16 %v301
      %v346 = vunpack.c.l.b16 %v302
      %v347 = vunpack.c.l.b16 %v303
      %v348 = vunpack.c.l.b16 %v304
      %v349 = vunpack.c.l.b16 %v305
      %v350 = vunpack.c.l.b16 %v306
      %v351 = vunpack.c.l.b16 %v307
      %v352 = vunpack.c.l.b16 %v308
      %v353 = vunpack.c.l.b16 %v309
      %v354 = vunpack.c.l.b16 %v310
      %v355 = vunpack.c.l.b16 %v311
      %v356 = vpack.c.b16 %v345, %v344
      %v357 = vpack.c.b16 %v347, %v346
      %v358 = vpack.c.b16 %v349, %v348
      %v359 = vpack.c.b16 %v351, %v350
      %v360 = vpack.c.b16 %v353, %v352
      %v361 = vpack.c.b16 %v355, %v354
      %vm368 = vcmask 785408
      %v370 = vsel %vm368, %v328, 0
      %v373 = vsel %vm368, %v329, 0
      %v376 = vsel %vm368, %v330, 0
      %v379 = vsel %vm368, %v331, 0
      %381 = vmatpush.bf16.msra.mxu0 0
      %382 = vmatpush.bf16.msra.mxu0 0
      %383 = vmatpush.bf16.msra.mxu0 %v361
      %384 = vmatpush.bf16.msra.mxu0 %v360
      %385 = vmatpush.bf16.msra.mxu0 %v359
      %386 = vmatpush.bf16.msra.mxu0 %v358
      %387 = vmatpush.bf16.msra.mxu0 %v357
      %388 = vmatpush.bf16.msra.mxu0 %v356
      %389 = vmatmul.bf16.gmra.mxu0 %v370
      %v390 = vpop.f32.mrf.mxu0
      %v391 = vadd.f32 0.0, %v390
      %v392 = vpop.f32.mrf.mxu0
      %v393 = vadd.f32 0.0, %v392
      %394 = vmatmul.bf16.gmra.mxu0 %v373
      %v395 = vpop.f32.mrf.mxu0
      %v396 = vadd.f32 0.0, %v395
      %v397 = vpop.f32.mrf.mxu0
      %v398 = vadd.f32 0.0, %v397
      %399 = vmatmul.bf16.gmra.mxu0 %v376
      %v400 = vpop.f32.mrf.mxu0
      %v401 = vadd.f32 0.0, %v400
      %v402 = vpop.f32.mrf.mxu0
      %v403 = vadd.f32 0.0, %v402
      %404 = vmatmul.bf16.gmra.mxu0 %v379
      %v405 = vpop.f32.mrf.mxu0
      %v406 = vadd.f32 0.0, %v405
      %v407 = vpop.f32.mrf.mxu0
      %v408 = vadd.f32 0.0, %v407
      %409 = vdwg.mxu0
      %v410 = vld [vmem:[%s280] sm:$0xff]
      %v411 = vpack.c.bf16 %v410, %v410
      %v412 = vld [vmem:[%s4] sm:$0xf]
      %v413 = vld [vmem:[%s4 + $0x4] sm:$0xf]
      %v414 = vld [vmem:[%s4 + $0x8] sm:$0xf]
      %v415 = vld [vmem:[%s4 + $0xc] sm:$0xf]
      %v416 = vld [vmem:[%s4 + $0x10] sm:$0xf]
      %v417 = vld [vmem:[%s4 + $0x14] sm:$0xf]
      %v418 = vld [vmem:[%s4 + $0x18] sm:$0xf]
      %v419 = vld [vmem:[%s4 + $0x1c] sm:$0xf]
      %v420 = vld [vmem:[%s5] sm:$0x1]
      %v422 = vperm.slane %v420, 0
      %v432 = vunpack.c.l.b16 %v412
      %v433 = vunpack.c.l.b16 %v413
      %v434 = vunpack.c.l.b16 %v414
      %v435 = vunpack.c.l.b16 %v415
      %v436 = vunpack.c.l.b16 %v416
      %v437 = vunpack.c.l.b16 %v417
      %v438 = vunpack.c.l.b16 %v418
      %v439 = vunpack.c.l.b16 %v419
      %v440 = vpack.c.b16 %v433, %v432
      %v441 = vpack.c.b16 %v435, %v434
      %v442 = vpack.c.b16 %v437, %v436
      %v443 = vpack.c.b16 %v439, %v438
      %vm448 = vcmask 523264
      %v450 = vsel %vm448, %v411, 0
      %452 = vmatpush.bf16.msra.mxu0 0
      %453 = vmatpush.bf16.msra.mxu0 0
      %454 = vmatpush.bf16.msra.mxu0 0
      %455 = vmatpush.bf16.msra.mxu0 0
      %456 = vmatpush.bf16.msra.mxu0 %v443
      %457 = vmatpush.bf16.msra.mxu0 %v442
      %458 = vmatpush.bf16.msra.mxu0 %v441
      %459 = vmatpush.bf16.msra.mxu0 %v440
      %460 = vmatmul.bf16.gmra.mxu0 %v450
      %v461 = vpop.f32.mrf.mxu0
      %v462 = vadd.f32 %v422, %v461
      %v463 = vpop.f32.mrf.mxu0
      %464 = vdwg.mxu0
      %v466 = vrot.slane %v462, 1
      %v467 = vrot.slane %v462, 2
      %v468 = vrot.slane %v462, 3
      %v469 = vrot.slane %v462, 4
      %v470 = vrot.slane %v462, 5
      %v471 = vrot.slane %v462, 6
      %v472 = vrot.slane %v462, 7
      %v473 = vperm.slane %v462, 0
      %v474 = vperm.slane %v466, 0
      %v475 = vperm.slane %v467, 0
      %v476 = vperm.slane %v468, 0
      %v477 = vperm.slane %v469, 0
      %v478 = vperm.slane %v470, 0
      %v479 = vperm.slane %v471, 0
      %v480 = vperm.slane %v472, 0
      %v489 = vadd.f32 %v391, %v473
      %v490 = vadd.f32 %v393, %v474
      %v491 = vadd.f32 %v396, %v475
      %v492 = vadd.f32 %v398, %v476
      %v493 = vadd.f32 %v401, %v477
      %v494 = vadd.f32 %v403, %v478
      %v495 = vadd.f32 %v406, %v479
      %v496 = vadd.f32 %v408, %v480
      %v497 = vld [vmem:[%s285] sm:$0xff]
      %v498 = vld [vmem:[%s285 + $0x8] sm:$0xff]
      %v499 = vld [vmem:[%s285 + $0x10] sm:$0xff]
      %v500 = vld [vmem:[%s285 + $0x18] sm:$0xff]
      %v501 = vld [vmem:[%s285 + $0x20] sm:$0xff]
      %v502 = vld [vmem:[%s285 + $0x28] sm:$0xff]
      %v503 = vld [vmem:[%s285 + $0x30] sm:$0xff]
      %v504 = vld [vmem:[%s285 + $0x38] sm:$0xff]
      %506 = vset.pattern.permute.xlu0 0
      %507 = vperm.xlu0 %506, %v497
      %v508 = vpop.permute.xlu0 %507
      %511 = vset.pattern.permute.xlu0 0
      %512 = vperm.xlu0 %511, %v498
      %v513 = vpop.permute.xlu0 %512
      %516 = vset.pattern.permute.xlu0 0
      %517 = vperm.xlu0 %516, %v499
      %v518 = vpop.permute.xlu0 %517
      %521 = vset.pattern.permute.xlu0 0
      %522 = vperm.xlu0 %521, %v500
      %v523 = vpop.permute.xlu0 %522
      %526 = vset.pattern.permute.xlu0 0
      %527 = vperm.xlu0 %526, %v501
      %v528 = vpop.permute.xlu0 %527
      %531 = vset.pattern.permute.xlu0 0
      %532 = vperm.xlu0 %531, %v502
      %v533 = vpop.permute.xlu0 %532
      %536 = vset.pattern.permute.xlu0 0
      %537 = vperm.xlu0 %536, %v503
      %v538 = vpop.permute.xlu0 %537
      %541 = vset.pattern.permute.xlu0 0
      %542 = vperm.xlu0 %541, %v504
      %v543 = vpop.permute.xlu0 %542
      %v545 = vmul.f32 %v489, %v508
      %v546 = vmul.f32 %v490, %v513
      %v547 = vmul.f32 %v491, %v518
      %v548 = vmul.f32 %v492, %v523
      %v549 = vmul.f32 %v493, %v528
      %v550 = vmul.f32 %v494, %v533
      %v551 = vmul.f32 %v495, %v538
      %v552 = vmul.f32 %v496, %v543
      %v553 = vadd.f32 %v545, %v546
      %v554 = vadd.f32 %v553, %v547
      %v555 = vadd.f32 %v554, %v548
      %v556 = vadd.f32 %v555, %v549
      %v557 = vadd.f32 %v556, %v550
      %v558 = vadd.f32 %v557, %v551
      %v559 = vadd.f32 %v558, %v552
      %v560 = vrot.slane %v559, 4
      %v561 = vadd.f32 %v559, %v560
      %v562 = vrot.slane %v561, 2
      %v563 = vadd.f32 %v561, %v562
      %v564 = vrot.slane %v563, 1
      %v565 = vadd.f32 %v563, %v564
      %v566 = vmul.f32 %v545, %v489
      %v567 = vmul.f32 %v546, %v490
      %v568 = vmul.f32 %v547, %v491
      %v569 = vmul.f32 %v548, %v492
      %v570 = vmul.f32 %v549, %v493
      %v571 = vmul.f32 %v550, %v494
      %v572 = vmul.f32 %v551, %v495
      %v573 = vmul.f32 %v552, %v496
      %v574 = vadd.f32 %v566, %v567
      %v575 = vadd.f32 %v574, %v568
      %v576 = vadd.f32 %v575, %v569
      %v577 = vadd.f32 %v576, %v570
      %v578 = vadd.f32 %v577, %v571
      %v579 = vadd.f32 %v578, %v572
      %v580 = vadd.f32 %v579, %v573
      %v581 = vrot.slane %v580, 4
      %v582 = vadd.f32 %v580, %v581
      %v583 = vrot.slane %v582, 2
      %v584 = vadd.f32 %v582, %v583
      %v585 = vrot.slane %v584, 1
      %v586 = vadd.f32 %v584, %v585
      %v587 = vlaneseq
      %v588 = vshrl.u32 %v587, 7
      %vm589 = vcmp.eq.s32.totalorder %v588, 0
      %vm590 = vcmp.eq.s32.totalorder %v588, 1
      %v591 = vsel %vm590, %v586, 0.0
      %v592 = vsel %vm589, %v565, %v591
      %593 = vst [vmem:[%s290] sm:$0xff] %v592
      %p594 = scmp.lt.s32.totalorder %s17, 1
      %s595 = scalar_select %p594, %s17, 1
      %s596 = smul.addr %s595, 8
      %s597 = scalar_lea.vmem %s6, %s596
      // Predicated region
      $region45: #{conv_layer_forward.2} parent=43 // pred_check
        %p598 = pneg %p176
      $region46: #{conv_layer_forward.2} parent=43 // pred_check_branch
        %600 = sbr.rel (%p598) target = $region48
      $region47: #{conv_layer_forward.2} parent=43 // pred_region
        _
      $region48: #{conv_layer_forward.2} parent=43 // pred_fallthru
        _
    $region44: #{conv_layer_forward.2} parent=5 // pred_fallthru
      _
    %p601 = scmp.le.s32.totalorder 2, %s12
    // Predicated region
    $region49: #{conv_layer_forward.2} parent=5 // pred_check
      %p602 = pneg %p601
    $region50: #{conv_layer_forward.2} parent=5 // pred_check_branch
      %604 = sbr.rel (%p602) target = $region52
    $region51: #{conv_layer_forward.2} parent=5 // pred_region
      %s605 = ssub.s32 %s12, 2
      // Predicated region
      $region53: #{conv_layer_forward.2} parent=51 // pred_check
        %p606 = pneg %p182
      $region54: #{conv_layer_forward.2} parent=51 // pred_check_branch
        %608 = sbr.rel (%p606) target = $region56
      $region55: #{conv_layer_forward.2} parent=51 // pred_region
        %p609 = scmp.lt.s32.totalorder %s18, 1
        %s610 = scalar_select %p609, %s18, 1
        %s611 = smul.addr %s610, 8
        %s612 = scalar_lea.vmem %s6, %s611
      $region56: #{conv_layer_forward.2} parent=51 // pred_fallthru
        _
    $region52: #{conv_layer_forward.2} parent=5 // pred_fallthru
      _
  $region6: #{conv_layer_forward.2} parent=0 // loop_footer
    %s16 = sadd.s32 1, %s12
  $region7: #{conv_layer_forward.2} parent=0 // loop_footer_branch
    %11 = sbr.rel target = $region3
  $region8: #{conv_layer_forward.2} parent=0 // loop_exit
    _

// kernel: conv_layer_forward.3
$region0: #{conv_layer_forward.3}
  #allocation0 [shape = 'u32[]', space=smem, size = 0x4, offset = 0x4, fixed_abs, tag = 'smem constant byte address 0x4 - core index']
  #allocation1 [shape = 'u32[72,128]{1,0:T(1,128)}', space=vmem, size = 0x9000, scoped, tag = 'internal scratch']
  %s0 = inlined_call_operand.vmem [shape: bf16[128,96], index: 0, kind: input, shape index: {}]
  %s1 = inlined_call_operand.vmem [shape: f32[16,64], index: 1, kind: input, shape index: {}]
  %s2 = inlined_call_operand.vmem [shape: f32[16,8,1], index: 2, kind: input, shape index: {}]
  %s3 = inlined_call_operand.vmem [shape: bf16[96,128], index: 3, kind: input, shape index: {}]
  %s4 = inlined_call_operand.vmem [shape: bf16[64,128], index: 4, kind: input, shape index: {}]
  %s5 = inlined_call_operand.vmem [shape: f32[1,128], index: 5, kind: input, shape index: {}]
  %s6 = inlined_call_operand.vmem [shape: f32[1,128], index: 6, kind: input, shape index: {}]
  %s7 = inlined_call_operand.vmem [shape: f32[1,128], index: 7, kind: input, shape index: {}]
  %s8 = inlined_call_operand.vmem [shape: f32[16,128], index: 8, kind: output, shape index: {}]
  %s9 = sld [smem:[#allocation0]]
  $region65: #{conv_layer_forward.3} parent=0
    _
  %s11 = ssub.s32 1, %s9
  %s12 = scalar_select 0, %s11, %s9
  loop: start=0, step=1, limit=4
  $region2: #{conv_layer_forward.3} parent=0 // loop_pre_header
    _
  $region3: #{conv_layer_forward.3} parent=0 // loop_header
    %s14 = sphi 0, %s18
    %p15 = scmp.ge.s32.totalorder %s14, 4
    %s24 = sphi 0, %s26
    %s27 = sphi 0, %s24
    %s28 = sphi 0, %s27
    %s44 = sphi 0, %s28
    %s50 = sphi 0, %s52
    %s53 = sphi 0, %s50
    %s54 = sphi 0, %s53
    %s70 = sphi 0, %s54
    %s76 = sphi 0, %s78
    %s79 = sphi 0, %s76
    %s80 = sphi 0, %s79
    %s96 = sphi 0, %s80
    %s100 = sphi 0, %s100
    %s102 = sphi 0, %s100
    %s103 = sphi 0, %s102
    %s117 = sphi 0, %s103
    %s121 = sphi 0, %s121
    %s123 = sphi 0, %s121
    %s124 = sphi 0, %s123
    %s138 = sphi 0, %s124
    %s142 = sphi 0, %s142
    %s144 = sphi 0, %s142
    %s145 = sphi 0, %s144
    %s159 = sphi 0, %s145
    %s163 = sphi 0, %s163
    %s165 = sphi 0, %s163
    %s166 = sphi 0, %s165
    %s180 = sphi 0, %s166
    %s184 = sphi 0, %s184
    %s186 = sphi 0, %s184
    %s187 = sphi 0, %s186
    %s201 = sphi 0, %s187
    %s207 = sphi 0, %s209
    %s210 = sphi 0, %s207
    %s211 = sphi 0, %s210
    %s227 = sphi 0, %s211
  $region4: #{conv_layer_forward.3} parent=0 // loop_header_branch
    %17 = sbr.rel (%p15) target = $region8
  $region5: #{conv_layer_forward.3} parent=0 // loop_body
    %s19 = ssub.s32 %s14, 1
    %s20 = ssub.s32 %s14, 2
    %s21 = sadd.s32 %s14, 1
    %s22 = ssub.s32 %s14, %s21
    %p23 = scmp.eq.s32.totalorder %s22, 0
    %s25 = sadd.s32 %s24, 1
    %s26 = scalar_select %p23, %s24, %s25
    %p29 = pneg %p23
    %p30 = scmp.eq.s32.totalorder %s14, 1
    %p31 = por %p29, %p30
    %p32 = scmp.ne.s32.totalorder %s24, %s27
    %p33 = scmp.eq.s32.totalorder %s14, 0
    %p34 = por %p32, %p33
    %p35 = scmp.ne.s32.totalorder %s24, %s27
    %p36 = scmp.eq.s32.totalorder %s19, 1
    %p37 = por %p35, %p36
    %p38 = scmp.ne.s32.totalorder %s27, %s28
    %p39 = scmp.eq.s32.totalorder %s19, 0
    %p40 = por %p38, %p39
    %p41 = scmp.ne.s32.totalorder %s27, %s28
    %p42 = scmp.eq.s32.totalorder %s20, 1
    %p43 = por %p41, %p42
    %p45 = scmp.ne.s32.totalorder %s28, %s44
    %p46 = scmp.eq.s32.totalorder %s20, 0
    %p47 = por %p45, %p46
    %s48 = ssub.s32 %s14, %s21
    %p49 = scmp.eq.s32.totalorder %s48, 0
    %s51 = sadd.s32 %s50, 1
    %s52 = scalar_select %p49, %s50, %s51
    %p55 = pneg %p49
    %p56 = scmp.eq.s32.totalorder %s14, 1
    %p57 = por %p55, %p56
    %p58 = scmp.ne.s32.totalorder %s50, %s53
    %p59 = scmp.eq.s32.totalorder %s14, 0
    %p60 = por %p58, %p59
    %p61 = scmp.ne.s32.totalorder %s50, %s53
    %p62 = scmp.eq.s32.totalorder %s19, 1
    %p63 = por %p61, %p62
    %p64 = scmp.ne.s32.totalorder %s53, %s54
    %p65 = scmp.eq.s32.totalorder %s19, 0
    %p66 = por %p64, %p65
    %p67 = scmp.ne.s32.totalorder %s53, %s54
    %p68 = scmp.eq.s32.totalorder %s20, 1
    %p69 = por %p67, %p68
    %p71 = scmp.ne.s32.totalorder %s54, %s70
    %p72 = scmp.eq.s32.totalorder %s20, 0
    %p73 = por %p71, %p72
    %s74 = ssub.s32 %s14, %s21
    %p75 = scmp.eq.s32.totalorder %s74, 0
    %s77 = sadd.s32 %s76, 1
    %s78 = scalar_select %p75, %s76, %s77
    %p81 = pneg %p75
    %p82 = scmp.eq.s32.totalorder %s14, 1
    %p83 = por %p81, %p82
    %p84 = scmp.ne.s32.totalorder %s76, %s79
    %p85 = scmp.eq.s32.totalorder %s14, 0
    %p86 = por %p84, %p85
    %p87 = scmp.ne.s32.totalorder %s76, %s79
    %p88 = scmp.eq.s32.totalorder %s19, 1
    %p89 = por %p87, %p88
    %p90 = scmp.ne.s32.totalorder %s79, %s80
    %p91 = scmp.eq.s32.totalorder %s19, 0
    %p92 = por %p90, %p91
    %p93 = scmp.ne.s32.totalorder %s79, %s80
    %p94 = scmp.eq.s32.totalorder %s20, 1
    %p95 = por %p93, %p94
    %p97 = scmp.ne.s32.totalorder %s80, %s96
    %p98 = scmp.eq.s32.totalorder %s20, 0
    %p99 = por %p97, %p98
    %s101 = sadd.s32 %s100, 1
    %p104 = scmp.eq.s32.totalorder %s14, 1
    %p105 = scmp.ne.s32.totalorder %s100, %s102
    %p106 = scmp.eq.s32.totalorder %s14, 0
    %p107 = por %p105, %p106
    %p108 = scmp.ne.s32.totalorder %s100, %s102
    %p109 = scmp.eq.s32.totalorder %s19, 1
    %p110 = por %p108, %p109
    %p111 = scmp.ne.s32.totalorder %s102, %s103
    %p112 = scmp.eq.s32.totalorder %s19, 0
    %p113 = por %p111, %p112
    %p114 = scmp.ne.s32.totalorder %s102, %s103
    %p115 = scmp.eq.s32.totalorder %s20, 1
    %p116 = por %p114, %p115
    %p118 = scmp.ne.s32.totalorder %s103, %s117
    %p119 = scmp.eq.s32.totalorder %s20, 0
    %p120 = por %p118, %p119
    %s122 = sadd.s32 %s121, 1
    %p125 = scmp.eq.s32.totalorder %s14, 1
    %p126 = scmp.ne.s32.totalorder %s121, %s123
    %p127 = scmp.eq.s32.totalorder %s14, 0
    %p128 = por %p126, %p127
    %p129 = scmp.ne.s32.totalorder %s121, %s123
    %p130 = scmp.eq.s32.totalorder %s19, 1
    %p131 = por %p129, %p130
    %p132 = scmp.ne.s32.totalorder %s123, %s124
    %p133 = scmp.eq.s32.totalorder %s19, 0
    %p134 = por %p132, %p133
    %p135 = scmp.ne.s32.totalorder %s123, %s124
    %p136 = scmp.eq.s32.totalorder %s20, 1
    %p137 = por %p135, %p136
    %p139 = scmp.ne.s32.totalorder %s124, %s138
    %p140 = scmp.eq.s32.totalorder %s20, 0
    %p141 = por %p139, %p140
    %s143 = sadd.s32 %s142, 1
    %p146 = scmp.eq.s32.totalorder %s14, 1
    %p147 = scmp.ne.s32.totalorder %s142, %s144
    %p148 = scmp.eq.s32.totalorder %s14, 0
    %p149 = por %p147, %p148
    %p150 = scmp.ne.s32.totalorder %s142, %s144
    %p151 = scmp.eq.s32.totalorder %s19, 1
    %p152 = por %p150, %p151
    %p153 = scmp.ne.s32.totalorder %s144, %s145
    %p154 = scmp.eq.s32.totalorder %s19, 0
    %p155 = por %p153, %p154
    %p156 = scmp.ne.s32.totalorder %s144, %s145
    %p157 = scmp.eq.s32.totalorder %s20, 1
    %p158 = por %p156, %p157
    %p160 = scmp.ne.s32.totalorder %s145, %s159
    %p161 = scmp.eq.s32.totalorder %s20, 0
    %p162 = por %p160, %p161
    %s164 = sadd.s32 %s163, 1
    %p167 = scmp.eq.s32.totalorder %s14, 1
    %p168 = scmp.ne.s32.totalorder %s163, %s165
    %p169 = scmp.eq.s32.totalorder %s14, 0
    %p170 = por %p168, %p169
    %p171 = scmp.ne.s32.totalorder %s163, %s165
    %p172 = scmp.eq.s32.totalorder %s19, 1
    %p173 = por %p171, %p172
    %p174 = scmp.ne.s32.totalorder %s165, %s166
    %p175 = scmp.eq.s32.totalorder %s19, 0
    %p176 = por %p174, %p175
    %p177 = scmp.ne.s32.totalorder %s165, %s166
    %p178 = scmp.eq.s32.totalorder %s20, 1
    %p179 = por %p177, %p178
    %p181 = scmp.ne.s32.totalorder %s166, %s180
    %p182 = scmp.eq.s32.totalorder %s20, 0
    %p183 = por %p181, %p182
    %s185 = sadd.s32 %s184, 1
    %p188 = scmp.eq.s32.totalorder %s14, 1
    %p189 = scmp.ne.s32.totalorder %s184, %s186
    %p190 = scmp.eq.s32.totalorder %s14, 0
    %p191 = por %p189, %p190
    %p192 = scmp.ne.s32.totalorder %s184, %s186
    %p193 = scmp.eq.s32.totalorder %s19, 1
    %p194 = por %p192, %p193
    %p195 = scmp.ne.s32.totalorder %s186, %s187
    %p196 = scmp.eq.s32.totalorder %s19, 0
    %p197 = por %p195, %p196
    %p198 = scmp.ne.s32.totalorder %s186, %s187
    %p199 = scmp.eq.s32.totalorder %s20, 1
    %p200 = por %p198, %p199
    %p202 = scmp.ne.s32.totalorder %s187, %s201
    %p203 = scmp.eq.s32.totalorder %s20, 0
    %p204 = por %p202, %p203
    %s205 = ssub.s32 %s14, %s21
    %p206 = scmp.eq.s32.totalorder %s205, 0
    %s208 = sadd.s32 %s207, 1
    %s209 = scalar_select %p206, %s207, %s208
    %p212 = pneg %p206
    %p213 = scmp.eq.s32.totalorder %s14, 1
    %p214 = por %p212, %p213
    %p215 = scmp.ne.s32.totalorder %s207, %s210
    %p216 = scmp.eq.s32.totalorder %s14, 0
    %p217 = por %p215, %p216
    %p218 = scmp.ne.s32.totalorder %s207, %s210
    %p219 = scmp.eq.s32.totalorder %s19, 1
    %p220 = por %p218, %p219
    %p221 = scmp.ne.s32.totalorder %s210, %s211
    %p222 = scmp.eq.s32.totalorder %s19, 0
    %p223 = por %p221, %p222
    %p224 = scmp.ne.s32.totalorder %s210, %s211
    %p225 = scmp.eq.s32.totalorder %s20, 1
    %p226 = por %p224, %p225
    %p228 = scmp.ne.s32.totalorder %s211, %s227
    %p229 = scmp.eq.s32.totalorder %s20, 0
    %p230 = por %p228, %p229
    %p231 = scmp.le.s32.totalorder 1, %s14
    %p232 = scmp.lt.s32.totalorder %s14, 3
    %p233 = pnand %p231, %p232
    %p234 = pneg %p233
    // Predicated region
    $region9: #{conv_layer_forward.3} parent=5 // pred_check
      _
    $region10: #{conv_layer_forward.3} parent=5 // pred_check_branch
      %236 = sbr.rel (%p233) target = $region12
    $region11: #{conv_layer_forward.3} parent=5 // pred_region
      %s237 = ssub.s32 %s14, 1
      // Predicated region
      $region13: #{conv_layer_forward.3} parent=11 // pred_check
        %p238 = pneg %p113
      $region14: #{conv_layer_forward.3} parent=11 // pred_check_branch
        %240 = sbr.rel (%p238) target = $region16
      $region15: #{conv_layer_forward.3} parent=11 // pred_region
        _
      $region16: #{conv_layer_forward.3} parent=11 // pred_fallthru
        _
      // Predicated region
      $region17: #{conv_layer_forward.3} parent=11 // pred_check
        %p241 = pneg %p134
      $region18: #{conv_layer_forward.3} parent=11 // pred_check_branch
        %243 = sbr.rel (%p241) target = $region20
      $region19: #{conv_layer_forward.3} parent=11 // pred_region
        _
      $region20: #{conv_layer_forward.3} parent=11 // pred_fallthru
        _
      // Predicated region
      $region21: #{conv_layer_forward.3} parent=11 // pred_check
        %p244 = pneg %p155
      $region22: #{conv_layer_forward.3} parent=11 // pred_check_branch
        %246 = sbr.rel (%p244) target = $region24
      $region23: #{conv_layer_forward.3} parent=11 // pred_region
        _
      $region24: #{conv_layer_forward.3} parent=11 // pred_fallthru
        _
      // Predicated region
      $region25: #{conv_layer_forward.3} parent=11 // pred_check
        %p247 = pneg %p176
      $region26: #{conv_layer_forward.3} parent=11 // pred_check_branch
        %249 = sbr.rel (%p247) target = $region28
      $region27: #{conv_layer_forward.3} parent=11 // pred_region
        _
      $region28: #{conv_layer_forward.3} parent=11 // pred_fallthru
        _
      // Predicated region
      $region29: #{conv_layer_forward.3} parent=11 // pred_check
        %p250 = pneg %p197
      $region30: #{conv_layer_forward.3} parent=11 // pred_check_branch
        %252 = sbr.rel (%p250) target = $region32
      $region31: #{conv_layer_forward.3} parent=11 // pred_region
        _
      $region32: #{conv_layer_forward.3} parent=11 // pred_fallthru
        _
    $region12: #{conv_layer_forward.3} parent=5 // pred_fallthru
      _
    %p253 = scmp.lt.s32.totalorder %s14, 2
    // Predicated region
    $region33: #{conv_layer_forward.3} parent=5 // pred_check
      %p254 = pneg %p253
    $region34: #{conv_layer_forward.3} parent=5 // pred_check_branch
      %256 = sbr.rel (%p254) target = $region36
    $region35: #{conv_layer_forward.3} parent=5 // pred_region
      // Predicated region
      $region37: #{conv_layer_forward.3} parent=35 // pred_check
        %p257 = pneg %p34
      $region38: #{conv_layer_forward.3} parent=35 // pred_check_branch
        %259 = sbr.rel (%p257) target = $region40
      $region39: #{conv_layer_forward.3} parent=35 // pred_region
        %s260 = smul.u32 8, %s14
        %p261 = scmp.lt.s32.totalorder %s260, 15
        %s262 = scalar_select %p261, %s260, 15
        %s263 = smul.addr %s262, 4
        %s264 = scalar_lea.vmem %s0, %s263
        %s265 = smul.u32 8, %s14
      $region40: #{conv_layer_forward.3} parent=35 // pred_fallthru
        _
      // Predicated region
      $region41: #{conv_layer_forward.3} parent=35 // pred_check
        %p266 = pneg %p60
      $region42: #{conv_layer_forward.3} parent=35 // pred_check_branch
        %268 = sbr.rel (%p266) target = $region44
      $region43: #{conv_layer_forward.3} parent=35 // pred_region
        %p269 = scmp.lt.s32.totalorder %s14, 1
        %s270 = scalar_select %p269, %s14, 1
        %s271 = smul.addr %s270, 8
        %s272 = scalar_lea.vmem %s1, %s271
      $region44: #{conv_layer_forward.3} parent=35 // pred_fallthru
        _
      // Predicated region
      $region45: #{conv_layer_forward.3} parent=35 // pred_check
        %p273 = pneg %p86
      $region46: #{conv_layer_forward.3} parent=35 // pred_check_branch
        %275 = sbr.rel (%p273) target = $region48
      $region47: #{conv_layer_forward.3} parent=35 // pred_region
        %s276 = smul.u32 8, %s14
        %p277 = scmp.lt.s32.totalorder %s276, 15
        %s278 = scalar_select %p277, %s276, 15
        %s279 = smul.addr %s278, 8
        %s280 = scalar_lea.vmem %s2, %s279
        %s281 = smul.u32 8, %s14
      $region48: #{conv_layer_forward.3} parent=35 // pred_fallthru
        _
    $region36: #{conv_layer_forward.3} parent=5 // pred_fallthru
      _
    %p282 = scmp.le.s32.totalorder 1, %s14
    %p283 = scmp.lt.s32.totalorder %s14, 3
    %p284 = pnand %p282, %p283
    %p285 = pneg %p284
    // Predicated region
    $region49: #{conv_layer_forward.3} parent=5 // pred_check
      _
    $region50: #{conv_layer_forward.3} parent=5 // pred_check_branch
      %287 = sbr.rel (%p284) target = $region52
    $region51: #{conv_layer_forward.3} parent=5 // pred_region
      %s288 = ssub.s32 %s14, 1
      %s289 = smul.u32 8, %s19
      %p290 = scmp.lt.s32.totalorder %s289, 15
      %s291 = scalar_select %p290, %s289, 15
      %s292 = smul.addr %s291, 4
      %s293 = scalar_lea.vmem %s0, %s292
      %p294 = pneg %p40
      %p295 = pneg %p37
      %p296 = scmp.lt.s32.totalorder %s19, 1
      %s297 = scalar_select %p296, %s19, 1
      %s298 = smul.addr %s297, 8
      %s299 = scalar_lea.vmem %s1, %s298
      %p300 = pneg %p66
      %p301 = pneg %p63
      %s302 = smul.u32 8, %s19
      %p303 = scmp.lt.s32.totalorder %s302, 15
      %s304 = scalar_select %p303, %s302, 15
      %s305 = smul.addr %s304, 8
      %s306 = scalar_lea.vmem %s2, %s305
      %p307 = pneg %p92
      %p308 = pneg %p89
      %p309 = pneg %p113
      %p310 = pneg %p110
      %p311 = pneg %p134
      %p312 = pneg %p131
      %p313 = pneg %p155
      %p314 = pneg %p152
      %p315 = pneg %p176
      %p316 = pneg %p173
      %p317 = pneg %p197
      %p318 = pneg %p194
      %p319 = pneg %p223
      %p320 = pneg %p220
      %p321 = scmp.lt.s32.totalorder %s19, 1
      %s322 = scalar_select %p321, %s19, 1
      %s323 = smul.addr %s322, 8
      %s324 = scalar_lea.vmem %s8, %s323
      %s325 = smul.u32 8, %s19
      %p326 = scmp.lt.s32.totalorder %s325, 15
      %s327 = scalar_select %p326, %s325, 15
      %s328 = smul.addr %s327, 4
      %s329 = scalar_lea.vmem %s0, %s328
      %s330 = smul.u32 8, %s19
      %p331 = scmp.lt.s32.totalorder %s19, 1
      %s332 = scalar_select %p331, %s19, 1
      %s333 = smul.addr %s332, 8
      %s334 = scalar_lea.vmem %s1, %s333
      %s335 = smul.u32 8, %s19
      %p336 = scmp.lt.s32.totalorder %s335, 15
      %s337 = scalar_select %p336, %s335, 15
      %s338 = smul.addr %s337, 8
      %s339 = scalar_lea.vmem %s2, %s338
      %s340 = smul.u32 8, %s19
      %p341 = scmp.lt.s32.totalorder %s19, 1
      %s342 = scalar_select %p341, %s19, 1
      %s343 = smul.addr %s342, 8
      %s344 = scalar_lea.vmem %s8, %s343
      %v346 = vld [vmem:[%s329] sm:$0xf]
      %v347 = vld [vmem:[%s329 + $0x4] sm:$0xf]
      %v348 = vld [vmem:[%s329 + $0x8] sm:$0xf]
      %v349 = vld [vmem:[%s329 + $0xc] sm:$0xf]
      %v350 = vld [vmem:[%s329 + $0x10] sm:$0xf]
      %v351 = vld [vmem:[%s329 + $0x14] sm:$0xf]
      %v352 = vld [vmem:[%s329 + $0x18] sm:$0xf]
      %v353 = vld [vmem:[%s329 + $0x1c] sm:$0xf]
      %v354 = vld [vmem:[%s3] sm:$0xf]
      %v355 = vld [vmem:[%s3 + $0x4] sm:$0xf]
      %v356 = vld [vmem:[%s3 + $0x8] sm:$0xf]
      %v357 = vld [vmem:[%s3 + $0xc] sm:$0xf]
      %v358 = vld [vmem:[%s3 + $0x10] sm:$0xf]
      %v359 = vld [vmem:[%s3 + $0x14] sm:$0xf]
      %v360 = vld [vmem:[%s3 + $0x18] sm:$0xf]
      %v361 = vld [vmem:[%s3 + $0x1c] sm:$0xf]
      %v362 = vld [vmem:[%s3 + $0x20] sm:$0xf]
      %v363 = vld [vmem:[%s3 + $0x24] sm:$0xf]
      %v364 = vld [vmem:[%s3 + $0x28] sm:$0xf]
      %v365 = vld [vmem:[%s3 + $0x2c] sm:$0xf]
      %v374 = vunpack.c.l.b16 %v346
      %v375 = vunpack.c.l.b16 %v347
      %v376 = vunpack.c.l.b16 %v348
      %v377 = vunpack.c.l.b16 %v349
      %v378 = vunpack.c.l.b16 %v350
      %v379 = vunpack.c.l.b16 %v351
      %v380 = vunpack.c.l.b16 %v352
      %v381 = vunpack.c.l.b16 %v353
      %v382 = vpack.c.b16 %v375, %v374
      %v383 = vpack.c.b16 %v377, %v376
      %v384 = vpack.c.b16 %v379, %v378
      %v385 = vpack.c.b16 %v381, %v380
      %v398 = vunpack.c.l.b16 %v354
      %v399 = vunpack.c.l.b16 %v355
      %v400 = vunpack.c.l.b16 %v356
      %v401 = vunpack.c.l.b16 %v357
      %v402 = vunpack.c.l.b16 %v358
      %v403 = vunpack.c.l.b16 %v359
      %v404 = vunpack.c.l.b16 %v360
      %v405 = vunpack.c.l.b16 %v361
      %v406 = vunpack.c.l.b16 %v362
      %v407 = vunpack.c.l.b16 %v363
      %v408 = vunpack.c.l.b16 %v364
      %v409 = vunpack.c.l.b16 %v365
      %v410 = vpack.c.b16 %v399, %v398
      %v411 = vpack.c.b16 %v401, %v400
      %v412 = vpack.c.b16 %v403, %v402
      %v413 = vpack.c.b16 %v405, %v404
      %v414 = vpack.c.b16 %v407, %v406
      %v415 = vpack.c.b16 %v409, %v408
      %vm422 = vcmask 785408
      %v424 = vsel %vm422, %v382, 0
      %v427 = vsel %vm422, %v383, 0
      %v430 = vsel %vm422, %v384, 0
      %v433 = vsel %vm422, %v385, 0
      %435 = vmatpush.bf16.msra.mxu0 0
      %436 = vmatpush.bf16.msra.mxu0 0
      %437 = vmatpush.bf16.msra.mxu0 %v415
      %438 = vmatpush.bf16.msra.mxu0 %v414
      %439 = vmatpush.bf16.msra.mxu0 %v413
      %440 = vmatpush.bf16.msra.mxu0 %v412
      %441 = vmatpush.bf16.msra.mxu0 %v411
      %442 = vmatpush.bf16.msra.mxu0 %v410
      %443 = vmatmul.bf16.gmra.mxu0 %v424
      %v444 = vpop.f32.mrf.mxu0
      %v445 = vadd.f32 0.0, %v444
      %v446 = vpop.f32.mrf.mxu0
      %v447 = vadd.f32 0.0, %v446
      %448 = vmatmul.bf16.gmra.mxu0 %v427
      %v449 = vpop.f32.mrf.mxu0
      %v450 = vadd.f32 0.0, %v449
      %v451 = vpop.f32.mrf.mxu0
      %v452 = vadd.f32 0.0, %v451
      %453 = vmatmul.bf16.gmra.mxu0 %v430
      %v454 = vpop.f32.mrf.mxu0
      %v455 = vadd.f32 0.0, %v454
      %v456 = vpop.f32.mrf.mxu0
      %v457 = vadd.f32 0.0, %v456
      %458 = vmatmul.bf16.gmra.mxu0 %v433
      %v459 = vpop.f32.mrf.mxu0
      %v460 = vadd.f32 0.0, %v459
      %v461 = vpop.f32.mrf.mxu0
      %v462 = vadd.f32 0.0, %v461
      %463 = vdwg.mxu0
      %v464 = vld [vmem:[%s334] sm:$0xff]
      %v465 = vpack.c.bf16 %v464, %v464
      %v466 = vld [vmem:[%s4] sm:$0xf]
      %v467 = vld [vmem:[%s4 + $0x4] sm:$0xf]
      %v468 = vld [vmem:[%s4 + $0x8] sm:$0xf]
      %v469 = vld [vmem:[%s4 + $0xc] sm:$0xf]
      %v470 = vld [vmem:[%s4 + $0x10] sm:$0xf]
      %v471 = vld [vmem:[%s4 + $0x14] sm:$0xf]
      %v472 = vld [vmem:[%s4 + $0x18] sm:$0xf]
      %v473 = vld [vmem:[%s4 + $0x1c] sm:$0xf]
      %v474 = vld [vmem:[%s5] sm:$0x1]
      %v476 = vperm.slane %v474, 0
      %v486 = vunpack.c.l.b16 %v466
      %v487 = vunpack.c.l.b16 %v467
      %v488 = vunpack.c.l.b16 %v468
      %v489 = vunpack.c.l.b16 %v469
      %v490 = vunpack.c.l.b16 %v470
      %v491 = vunpack.c.l.b16 %v471
      %v492 = vunpack.c.l.b16 %v472
      %v493 = vunpack.c.l.b16 %v473
      %v494 = vpack.c.b16 %v487, %v486
      %v495 = vpack.c.b16 %v489, %v488
      %v496 = vpack.c.b16 %v491, %v490
      %v497 = vpack.c.b16 %v493, %v492
      %vm502 = vcmask 523264
      %v504 = vsel %vm502, %v465, 0
      %506 = vmatpush.bf16.msra.mxu0 0
      %507 = vmatpush.bf16.msra.mxu0 0
      %508 = vmatpush.bf16.msra.mxu0 0
      %509 = vmatpush.bf16.msra.mxu0 0
      %510 = vmatpush.bf16.msra.mxu0 %v497
      %511 = vmatpush.bf16.msra.mxu0 %v496
      %512 = vmatpush.bf16.msra.mxu0 %v495
      %513 = vmatpush.bf16.msra.mxu0 %v494
      %514 = vmatmul.bf16.gmra.mxu0 %v504
      %v515 = vpop.f32.mrf.mxu0
      %v516 = vadd.f32 %v476, %v515
      %v517 = vpop.f32.mrf.mxu0
      %518 = vdwg.mxu0
      %v520 = vrot.slane %v516, 1
      %v521 = vrot.slane %v516, 2
      %v522 = vrot.slane %v516, 3
      %v523 = vrot.slane %v516, 4
      %v524 = vrot.slane %v516, 5
      %v525 = vrot.slane %v516, 6
      %v526 = vrot.slane %v516, 7
      %v527 = vperm.slane %v516, 0
      %v528 = vperm.slane %v520, 0
      %v529 = vperm.slane %v521, 0
      %v530 = vperm.slane %v522, 0
      %v531 = vperm.slane %v523, 0
      %v532 = vperm.slane %v524, 0
      %v533 = vperm.slane %v525, 0
      %v534 = vperm.slane %v526, 0
      %v543 = vadd.f32 %v445, %v527
      %v544 = vadd.f32 %v447, %v528
      %v545 = vadd.f32 %v450, %v529
      %v546 = vadd.f32 %v452, %v530
      %v547 = vadd.f32 %v455, %v531
      %v548 = vadd.f32 %v457, %v532
      %v549 = vadd.f32 %v460, %v533
      %v550 = vadd.f32 %v462, %v534
      %v551 = vld [vmem:[%s6] sm:$0x1]
      %v553 = vperm.slane %v551, 0
      %v555 = vmul.f32 %v543, %v553
      %v556 = vmul.f32 %v544, %v553
      %v557 = vmul.f32 %v545, %v553
      %v558 = vmul.f32 %v546, %v553
      %v559 = vmul.f32 %v547, %v553
      %v560 = vmul.f32 %v548, %v553
      %v561 = vmul.f32 %v549, %v553
      %v562 = vmul.f32 %v550, %v553
      %v563 = vld [vmem:[%s7] sm:$0x1]
      %v565 = vperm.slane %v563, 0
      %v567 = vadd.f32 %v555, %v565
      %v568 = vadd.f32 %v556, %v565
      %v569 = vadd.f32 %v557, %v565
      %v570 = vadd.f32 %v558, %v565
      %v571 = vadd.f32 %v559, %v565
      %v572 = vadd.f32 %v560, %v565
      %v573 = vadd.f32 %v561, %v565
      %v574 = vadd.f32 %v562, %v565
      %v575 = vand.u32 2147483647, %v567
      %v576 = vand.u32 2147483647, %v568
      %v577 = vand.u32 2147483647, %v569
      %v578 = vand.u32 2147483647, %v570
      %v579 = vand.u32 2147483647, %v571
      %v580 = vand.u32 2147483647, %v572
      %v581 = vand.u32 2147483647, %v573
      %v582 = vand.u32 2147483647, %v574
      %v583 = vsub.f32 0.0, %v575
      %v584 = vsub.f32 0.0, %v576
      %v585 = vsub.f32 0.0, %v577
      %v586 = vsub.f32 0.0, %v578
      %v587 = vsub.f32 0.0, %v579
      %v588 = vsub.f32 0.0, %v580
      %v589 = vsub.f32 0.0, %v581
      %v590 = vsub.f32 0.0, %v582
      %v591 = vmul.f32 %v583, 1.442695
      %v592 = vpow.pop %v591
      %v593 = vmul.f32 %v584, 1.442695
      %v594 = vpow.pop %v593
      %v595 = vmul.f32 %v585, 1.442695
      %v596 = vpow.pop %v595
      %v597 = vmul.f32 %v586, 1.442695
      %v598 = vpow.pop %v597
      %v599 = vmul.f32 %v587, 1.442695
      %v600 = vpow.pop %v599
      %v601 = vmul.f32 %v588, 1.442695
      %v602 = vpow.pop %v601
      %v603 = vmul.f32 %v589, 1.442695
      %v604 = vpow.pop %v603
      %v605 = vmul.f32 %v590, 1.442695
      %v606 = vpow.pop %v605
      %v607 = vadd.f32 %v592, 1.0
      %v608 = vadd.f32 %v594, 1.0
      %v609 = vadd.f32 %v596, 1.0
      %v610 = vadd.f32 %v598, 1.0
      %v611 = vadd.f32 %v600, 1.0
      %v612 = vadd.f32 %v602, 1.0
      %v613 = vadd.f32 %v604, 1.0
      %v614 = vadd.f32 %v606, 1.0
      %v615 = vrcp.pop %v607
      %v616 = vrcp.pop %v608
      %v617 = vrcp.pop %v609
      %v618 = vrcp.pop %v610
      %v619 = vrcp.pop %v611
      %v620 = vrcp.pop %v612
      %v621 = vrcp.pop %v613
      %v622 = vrcp.pop %v614
      %vm623 = vcmp.ge.f32.partialorder %v567, 0.0
      %vm624 = vcmp.ge.f32.partialorder %v568, 0.0
      %vm625 = vcmp.ge.f32.partialorder %v569, 0.0
      %vm626 = vcmp.ge.f32.partialorder %v570, 0.0
      %vm627 = vcmp.ge.f32.partialorder %v571, 0.0
      %vm628 = vcmp.ge.f32.partialorder %v572, 0.0
      %vm629 = vcmp.ge.f32.partialorder %v573, 0.0
      %vm630 = vcmp.ge.f32.partialorder %v574, 0.0
      %v631 = vsel %vm623, 1.0, %v592
      %v632 = vsel %vm624, 1.0, %v594
      %v633 = vsel %vm625, 1.0, %v596
      %v634 = vsel %vm626, 1.0, %v598
      %v635 = vsel %vm627, 1.0, %v600
      %v636 = vsel %vm628, 1.0, %v602
      %v637 = vsel %vm629, 1.0, %v604
      %v638 = vsel %vm630, 1.0, %v606
      %v639 = vmul.f32 %v631, %v615
      %v640 = vmul.f32 %v632, %v616
      %v641 = vmul.f32 %v633, %v617
      %v642 = vmul.f32 %v634, %v618
      %v643 = vmul.f32 %v635, %v619
      %v644 = vmul.f32 %v636, %v620
      %v645 = vmul.f32 %v637, %v621
      %v646 = vmul.f32 %v638, %v622
      %v647 = vmax.f32 %v567, 0.0
      %v648 = vmax.f32 %v568, 0.0
      %v649 = vmax.f32 %v569, 0.0
      %v650 = vmax.f32 %v570, 0.0
      %v651 = vmax.f32 %v571, 0.0
      %v652 = vmax.f32 %v572, 0.0
      %v653 = vmax.f32 %v573, 0.0
      %v654 = vmax.f32 %v574, 0.0
      %v655 = vadd.f32 %v592, 1.0
      %v656 = vlog2.pop %v655
      %v657 = vmul.f32 %v656, 0.6931472
      %v658 = vmul.f32 -0.5, %v592
      %v659 = vadd.f32 %v658, 1.0
      %v660 = vmul.f32 %v659, %v592
      %v661 = vand.u32 2147483647, %v592
      %vm662 = vcmp.lt.f32.partialorder %v661, 0.0004427343
      %v663 = vsel %vm662, %v660, %v657
      %v664 = vadd.f32 %v594, 1.0
      %v665 = vlog2.pop %v664
      %v666 = vmul.f32 %v665, 0.6931472
      %v667 = vmul.f32 -0.5, %v594
      %v668 = vadd.f32 %v667, 1.0
      %v669 = vmul.f32 %v668, %v594
      %v670 = vand.u32 2147483647, %v594
      %vm671 = vcmp.lt.f32.partialorder %v670, 0.0004427343
      %v672 = vsel %vm671, %v669, %v666
      %v673 = vadd.f32 %v596, 1.0
      %v674 = vlog2.pop %v673
      %v675 = vmul.f32 %v674, 0.6931472
      %v676 = vmul.f32 -0.5, %v596
      %v677 = vadd.f32 %v676, 1.0
      %v678 = vmul.f32 %v677, %v596
      %v679 = vand.u32 2147483647, %v596
      %vm680 = vcmp.lt.f32.partialorder %v679, 0.0004427343
      %v681 = vsel %vm680, %v678, %v675
      %v682 = vadd.f32 %v598, 1.0
      %v683 = vlog2.pop %v682
      %v684 = vmul.f32 %v683, 0.6931472
      %v685 = vmul.f32 -0.5, %v598
      %v686 = vadd.f32 %v685, 1.0
      %v687 = vmul.f32 %v686, %v598
      %v688 = vand.u32 2147483647, %v598
      %vm689 = vcmp.lt.f32.partialorder %v688, 0.0004427343
      %v690 = vsel %vm689, %v687, %v684
      %v691 = vadd.f32 %v600, 1.0
      %v692 = vlog2.pop %v691
      %v693 = vmul.f32 %v692, 0.6931472
      %v694 = vmul.f32 -0.5, %v600
      %v695 = vadd.f32 %v694, 1.0
      %v696 = vmul.f32 %v695, %v600
      %v697 = vand.u32 2147483647, %v600
      %vm698 = vcmp.lt.f32.partialorder %v697, 0.0004427343
      %v699 = vsel %vm698, %v696, %v693
      %v700 = vadd.f32 %v602, 1.0
      %v701 = vlog2.pop %v700
      %v702 = vmul.f32 %v701, 0.6931472
      %v703 = vmul.f32 -0.5, %v602
      %v704 = vadd.f32 %v703, 1.0
      %v705 = vmul.f32 %v704, %v602
      %v706 = vand.u32 2147483647, %v602
      %vm707 = vcmp.lt.f32.partialorder %v706, 0.0004427343
      %v708 = vsel %vm707, %v705, %v702
      %v709 = vadd.f32 %v604, 1.0
      %v710 = vlog2.pop %v709
      %v711 = vmul.f32 %v710, 0.6931472
      %v712 = vmul.f32 -0.5, %v604
      %v713 = vadd.f32 %v712, 1.0
      %v714 = vmul.f32 %v713, %v604
      %v715 = vand.u32 2147483647, %v604
      %vm716 = vcmp.lt.f32.partialorder %v715, 0.0004427343
      %v717 = vsel %vm716, %v714, %v711
      %v718 = vadd.f32 %v606, 1.0
      %v719 = vlog2.pop %v718
      %v720 = vmul.f32 %v719, 0.6931472
      %v721 = vmul.f32 -0.5, %v606
      %v722 = vadd.f32 %v721, 1.0
      %v723 = vmul.f32 %v722, %v606
      %v724 = vand.u32 2147483647, %v606
      %vm725 = vcmp.lt.f32.partialorder %v724, 0.0004427343
      %v726 = vsel %vm725, %v723, %v720
      %v727 = vadd.f32 %v647, %v663
      %v728 = vadd.f32 %v648, %v672
      %v729 = vadd.f32 %v649, %v681
      %v730 = vadd.f32 %v650, %v690
      %v731 = vadd.f32 %v651, %v699
      %v732 = vadd.f32 %v652, %v708
      %v733 = vadd.f32 %v653, %v717
      %v734 = vadd.f32 %v654, %v726
      %735 = vrot.lane.b32.xlu0 %v727, 64
      %v736 = vpop.permute.xlu0 %735
      %737 = vrot.lane.b32.xlu0 %v728, 64
      %v738 = vpop.permute.xlu0 %737
      %739 = vrot.lane.b32.xlu0 %v729, 64
      %v740 = vpop.permute.xlu0 %739
      %741 = vrot.lane.b32.xlu0 %v730, 64
      %v742 = vpop.permute.xlu0 %741
      %743 = vrot.lane.b32.xlu0 %v731, 64
      %v744 = vpop.permute.xlu0 %743
      %745 = vrot.lane.b32.xlu0 %v732, 64
      %v746 = vpop.permute.xlu0 %745
      %747 = vrot.lane.b32.xlu0 %v733, 64
      %v748 = vpop.permute.xlu0 %747
      %749 = vrot.lane.b32.xlu0 %v734, 64
      %v750 = vpop.permute.xlu0 %749
      %v751 = vmul.f32 %v639, %v736
      %v752 = vmul.f32 %v640, %v738
      %v753 = vmul.f32 %v641, %v740
      %v754 = vmul.f32 %v642, %v742
      %v755 = vmul.f32 %v643, %v744
      %v756 = vmul.f32 %v644, %v746
      %v757 = vmul.f32 %v645, %v748
      %v758 = vmul.f32 %v646, %v750
      %v759 = vld [vmem:[%s339] sm:$0xff]
      %v760 = vld [vmem:[%s339 + $0x8] sm:$0xff]
      %v761 = vld [vmem:[%s339 + $0x10] sm:$0xff]
      %v762 = vld [vmem:[%s339 + $0x18] sm:$0xff]
      %v763 = vld [vmem:[%s339 + $0x20] sm:$0xff]
      %v764 = vld [vmem:[%s339 + $0x28] sm:$0xff]
      %v765 = vld [vmem:[%s339 + $0x30] sm:$0xff]
      %v766 = vld [vmem:[%s339 + $0x38] sm:$0xff]
      %768 = vset.pattern.permute.xlu0 0
      %769 = vperm.xlu0 %768, %v759
      %v770 = vpop.permute.xlu0 %769
      %773 = vset.pattern.permute.xlu0 0
      %774 = vperm.xlu0 %773, %v760
      %v775 = vpop.permute.xlu0 %774
      %778 = vset.pattern.permute.xlu0 0
      %779 = vperm.xlu0 %778, %v761
      %v780 = vpop.permute.xlu0 %779
      %783 = vset.pattern.permute.xlu0 0
      %784 = vperm.xlu0 %783, %v762
      %v785 = vpop.permute.xlu0 %784
      %788 = vset.pattern.permute.xlu0 0
      %789 = vperm.xlu0 %788, %v763
      %v790 = vpop.permute.xlu0 %789
      %793 = vset.pattern.permute.xlu0 0
      %794 = vperm.xlu0 %793, %v764
      %v795 = vpop.permute.xlu0 %794
      %798 = vset.pattern.permute.xlu0 0
      %799 = vperm.xlu0 %798, %v765
      %v800 = vpop.permute.xlu0 %799
      %803 = vset.pattern.permute.xlu0 0
      %804 = vperm.xlu0 %803, %v766
      %v805 = vpop.permute.xlu0 %804
      %v807 = vmul.f32 %v751, %v770
      %v808 = vmul.f32 %v752, %v775
      %v809 = vmul.f32 %v753, %v780
      %v810 = vmul.f32 %v754, %v785
      %v811 = vmul.f32 %v755, %v790
      %v812 = vmul.f32 %v756, %v795
      %v813 = vmul.f32 %v757, %v800
      %v814 = vmul.f32 %v758, %v805
      %v815 = vrot.slane %v807, 4
      %v816 = vadd.f32 %v807, %v815
      %v817 = vrot.slane %v816, 2
      %v818 = vadd.f32 %v816, %v817
      %v819 = vrot.slane %v818, 1
      %v820 = vadd.f32 %v818, %v819
      %v821 = vrot.slane %v808, 4
      %v822 = vadd.f32 %v808, %v821
      %v823 = vrot.slane %v822, 2
      %v824 = vadd.f32 %v822, %v823
      %v825 = vrot.slane %v824, 1
      %v826 = vadd.f32 %v824, %v825
      %v827 = vrot.slane %v809, 4
      %v828 = vadd.f32 %v809, %v827
      %v829 = vrot.slane %v828, 2
      %v830 = vadd.f32 %v828, %v829
      %v831 = vrot.slane %v830, 1
      %v832 = vadd.f32 %v830, %v831
      %v833 = vrot.slane %v810, 4
      %v834 = vadd.f32 %v810, %v833
      %v835 = vrot.slane %v834, 2
      %v836 = vadd.f32 %v834, %v835
      %v837 = vrot.slane %v836, 1
      %v838 = vadd.f32 %v836, %v837
      %v839 = vrot.slane %v811, 4
      %v840 = vadd.f32 %v811, %v839
      %v841 = vrot.slane %v840, 2
      %v842 = vadd.f32 %v840, %v841
      %v843 = vrot.slane %v842, 1
      %v844 = vadd.f32 %v842, %v843
      %v845 = vrot.slane %v812, 4
      %v846 = vadd.f32 %v812, %v845
      %v847 = vrot.slane %v846, 2
      %v848 = vadd.f32 %v846, %v847
      %v849 = vrot.slane %v848, 1
      %v850 = vadd.f32 %v848, %v849
      %v851 = vrot.slane %v813, 4
      %v852 = vadd.f32 %v813, %v851
      %v853 = vrot.slane %v852, 2
      %v854 = vadd.f32 %v852, %v853
      %v855 = vrot.slane %v854, 1
      %v856 = vadd.f32 %v854, %v855
      %v857 = vrot.slane %v814, 4
      %v858 = vadd.f32 %v814, %v857
      %v859 = vrot.slane %v858, 2
      %v860 = vadd.f32 %v858, %v859
      %v861 = vrot.slane %v860, 1
      %v862 = vadd.f32 %v860, %v861
      %vm871 = vcmask 1041409
      %v872 = vsel %vm871, %v826, %v820
      %vm873 = vcmask 1042434
      %v874 = vsel %vm873, %v832, %v872
      %vm875 = vcmask 1043459
      %v876 = vsel %vm875, %v838, %v874
      %vm877 = vcmask 1044484
      %v878 = vsel %vm877, %v844, %v876
      %vm879 = vcmask 1045509
      %v880 = vsel %vm879, %v850, %v878
      %vm881 = vcmask 1046534
      %v882 = vsel %vm881, %v856, %v880
      %vm883 = vcmask 1047559
      %v884 = vsel %vm883, %v862, %v882
      %886 = vst [vmem:[%s344] sm:$0xff] %v884
      %p887 = scmp.lt.s32.totalorder %s19, 1
      %s888 = scalar_select %p887, %s19, 1
      %s889 = smul.addr %s888, 8
      %s890 = scalar_lea.vmem %s8, %s889
      // Predicated region
      $region53: #{conv_layer_forward.3} parent=51 // pred_check
        %p891 = pneg %p220
      $region54: #{conv_layer_forward.3} parent=51 // pred_check_branch
        %893 = sbr.rel (%p891) target = $region56
      $region55: #{conv_layer_forward.3} parent=51 // pred_region
        _
      $region56: #{conv_layer_forward.3} parent=51 // pred_fallthru
        _
    $region52: #{conv_layer_forward.3} parent=5 // pred_fallthru
      _
    %p894 = scmp.le.s32.totalorder 2, %s14
    // Predicated region
    $region57: #{conv_layer_forward.3} parent=5 // pred_check
      %p895 = pneg %p894
    $region58: #{conv_layer_forward.3} parent=5 // pred_check_branch
      %897 = sbr.rel (%p895) target = $region60
    $region59: #{conv_layer_forward.3} parent=5 // pred_region
      %s898 = ssub.s32 %s14, 2
      // Predicated region
      $region61: #{conv_layer_forward.3} parent=59 // pred_check
        %p899 = pneg %p226
      $region62: #{conv_layer_forward.3} parent=59 // pred_check_branch
        %901 = sbr.rel (%p899) target = $region64
      $region63: #{conv_layer_forward.3} parent=59 // pred_region
        %p902 = scmp.lt.s32.totalorder %s20, 1
        %s903 = scalar_select %p902, %s20, 1
        %s904 = smul.addr %s903, 8
        %s905 = scalar_lea.vmem %s8, %s904
      $region64: #{conv_layer_forward.3} parent=59 // pred_fallthru
        _
    $region60: #{conv_layer_forward.3} parent=5 // pred_fallthru
      _
  $region6: #{conv_layer_forward.3} parent=0 // loop_footer
    %s18 = sadd.s32 1, %s14
  $region7: #{conv_layer_forward.3} parent=0 // loop_footer_branch
    %13 = sbr.rel target = $region3
  $region8: #{conv_layer_forward.3} parent=0 // loop_exit
    _

</llo_original>
